<compile_context>
chip_gen: v6e
topology: v6e:2x2x1
jax: 0.10.0
libtpu: 0.0.40
codegen_flags: <defaults>
</compile_context>

<pallas_src>
import functools

import jax
import jax.numpy as jnp
import numpy as np
from jax.experimental import pallas as pl
from jax.experimental.pallas import tpu as pltpu

TEMPERATURE = 0.07
BASE_TEMPERATURE = 0.07
DOMAIN_NUMBER = 7

_NEG_BIG = -1e30                      # finite "-inf" (avoids 0 * -inf -> NaN)
_VMEM_LIMIT = 48 * 1024 * 1024        # safe on v5e/v6e (128 MiB) and v7x (64 MiB)


def _tile(total, tile):
    """Full extent if small (always a legal block), else an aligned tile + pad."""
    if total <= tile:
        return total, total
    padded = ((total + tile - 1) // tile) * tile
    return tile, padded


def _anchor_tile(B):
    # A full-extent block is always legal; only tile B when large & 128-aligned.
    if B <= 256 or (B % 128) != 0:
        return B
    return 128


# ----------------------------------------------------------------------------
# Branch 1: mask + domain-weighted supervised contrastive loss
#   grid = (anchor blocks, pass in {0,1}, N tiles)
# ----------------------------------------------------------------------------
def _supcon_masked_kernel(anch_ref, feat_ref, mask_ref, oneh_ref, w_ref, adom_ref,
                          out_ref,
                          mmax_sc, nepo_sc, sml_sc, smlog_sc, msum_sc,
                          *, N, TN, D, loss_scale, needs_col_mask):
    p = pl.program_id(1)              # 0: max + per-domain sum-exp ; 1: log-prob
    n = pl.program_id(2)              # tile index along the contrast dim N
    nt = pl.num_programs(2)

    @pl.when((p == 0) & (n == 0))
    def _init():
        mmax_sc[...] = jnp.full(mmax_sc.shape, _NEG_BIG, jnp.float32)
        nepo_sc[...] = jnp.zeros(nepo_sc.shape, jnp.float32)
        sml_sc[...] = jnp.zeros(sml_sc.shape, jnp.float32)
        smlog_sc[...] = jnp.zeros(smlog_sc.shape, jnp.float32)
        msum_sc[...] = jnp.zeros(msum_sc.shape, jnp.float32)
        out_ref[...] = jnp.zeros(out_ref.shape, jnp.float32)

    # anchors were pre-scaled by 1/temperature (f32) in the wrapper, so `adc`
    # is already features[:B] @ features.T / temperature for this tile.
    adc = jax.lax.dot_general(anch_ref[...], feat_ref[...],
                              (((1,), (1,)), ((), ())),
                              preferred_element_type=jnp.float32)        # (TB, TN)
    if needs_col_mask:                # only traced when N was padded
        col = n * TN + jax.lax.broadcasted_iota(jnp.int32, adc.shape, 1)
        adc = jnp.where(col < N, adc, _NEG_BIG)

    @pl.when(p == 0)
    def _pass0():
        m_prev = mmax_sc[...]
        m_new = jnp.maximum(m_prev, jnp.max(adc, axis=1, keepdims=True))
        alpha = jnp.exp(m_prev - m_new)
        # one MXU matmul instead of D masked cross-lane (XLU) reductions
        part = jax.lax.dot_general(jnp.exp(adc - m_new), oneh_ref[...],
                                   (((1,), (0,)), ((), ())),
                                   preferred_element_type=jnp.float32)   # (TB, D)
        nepo_sc[...] = nepo_sc[...] * alpha + part
        mmax_sc[...] = m_new

    @pl.when(p == 1)
    def _pass1():
        logits = adc - mmax_sc[...]           # mmax_sc now holds the global row max
        el = jnp.exp(logits)
        mt = mask_ref[...]                    # (TB, TN), anchor diagonal pre-zeroed
        sml_sc[...] += jnp.sum(mt * logits, axis=1, keepdims=True)
        msum_sc[...] += jnp.sum(mt, axis=1, keepdims=True)
        elp = el + 1e-12
        nepo = nepo_sc[...]                   # (TB, D) final per-domain sums
        for d in range(D):                    # D=7, static unroll; one log per domain
            smlog_sc[:, d:d + 1] += jnp.sum(
                mt * jnp.log(nepo[:, d:d + 1] + elp), axis=1, keepdims=True)

    @pl.when((p == 1) & (n == nt - 1))
    def _finalize():
        sml = sml_sc[...]
        ms = msum_sc[...]
        smlog = smlog_sc[...]
        ne = nepo_sc[...]
        adom = adom_ref[...]                  # (TB, 1) int32 anchor domain ids
        w = w_ref[...]                        # (TB, D) domain weights
        nlp = jnp.zeros(sml.shape, jnp.float32)
        for d in range(D):
            # anchor-in-domain rows: the log-denominator is constant over N
            in_d = sml - ms * jnp.log(ne[:, d:d + 1] + 1e-8)
            out_d = sml - smlog[:, d:d + 1]
            nlp = nlp + w[:, d:d + 1] * jnp.where(adom == d, in_d, out_d)
        # single hoisted reciprocal of mask.sum (guarded against all-zero rows)
        inv_ms = pl.reciprocal(jnp.maximum(ms, 1e-12), approx=True)
        out_ref[...] = (-loss_scale) * nlp * inv_ms


def supcon_loss_masked(features, mask, domain_score_cont, domain_target_cont,
                       batch_size, temperature=TEMPERATURE,
                       base_temperature=BASE_TEMPERATURE,
                       domain_number=DOMAIN_NUMBER):
    N, C = features.shape
    B = int(batch_size)
    D = int(domain_number)
    inv_temp = jnp.float32(1.0 / float(temperature))

    feats = features.astype(jnp.float32)
    anchors = feats[:B] * inv_temp                          # fold 1/T into (B,C) operand
    diag = jnp.arange(B)
    mask_z = mask.astype(jnp.float32).at[diag, diag].set(0.0)   # mask * logits_mask
    onehot = jax.nn.one_hot(domain_target_cont.reshape(-1).astype(jnp.int32), D,
                            dtype=jnp.float32)              # (N, D)
    w = domain_score_cont[:B].astype(jnp.float32)           # (B, D)
    adom = domain_target_cont.reshape(-1)[:B].reshape(B, 1).astype(jnp.int32)

    TN, N_pad = _tile(N, 512)                               # 8/128-aligned N tile
    if N_pad != N:
        pad = N_pad - N
        feats = jnp.pad(feats, ((0, pad), (0, 0)))
        mask_z = jnp.pad(mask_z, ((0, 0), (0, pad)))
        onehot = jnp.pad(onehot, ((0, pad), (0, 0)))
    NT = N_pad // TN
    TB = _anchor_tile(B)
    BT = B // TB

    kernel = functools.partial(
        _supcon_masked_kernel, N=N, TN=TN, D=D,
        loss_scale=float(temperature / base_temperature),
        needs_col_mask=(N_pad != N))

    per_anchor = pl.pallas_call(
        kernel,
        out_shape=jax.ShapeDtypeStruct((B, 1), jnp.float32),
        grid_spec=pltpu.PrefetchScalarGridSpec(
            num_scalar_prefetch=0,
            grid=(BT, 2, NT),                               # (anchor blocks, pass, N tiles)
            in_specs=[
                pl.BlockSpec((TB, C), lambda b, p, n: (b, 0)),        # anchors (resident)
                pl.BlockSpec((TN, C), lambda b, p, n: (n, 0)),        # features tiles
                pl.BlockSpec((TB, TN), lambda b, p, n: (b, n * p)),   # mask (only streamed in pass 1)
                pl.BlockSpec((TN, D), lambda b, p, n: (n * (1 - p), 0)),  # one-hot (only streamed in pass 0)
                pl.BlockSpec((TB, D), lambda b, p, n: (b, 0)),        # domain weights
                pl.BlockSpec((TB, 1), lambda b, p, n: (b, 0)),        # anchor domain ids
            ],
            out_specs=pl.BlockSpec((TB, 1), lambda b, p, n: (b, 0)),
            scratch_shapes=[
                pltpu.VMEM((TB, 1), jnp.float32),   # running row max
                pltpu.VMEM((TB, D), jnp.float32),   # per-domain sum of exp
                pltpu.VMEM((TB, 1), jnp.float32),   # sum(mask * logits)
                pltpu.VMEM((TB, D), jnp.float32),   # sum(mask * log(denom_d))
                pltpu.VMEM((TB, 1), jnp.float32),   # sum(mask)
            ]),
        compiler_params=pltpu.CompilerParams(
            dimension_semantics=("parallel", "arbitrary", "arbitrary"),
            vmem_limit_bytes=_VMEM_LIMIT),
    )(anchors, feats, mask_z, onehot, w, adom)
    return jnp.mean(per_anchor)


# ----------------------------------------------------------------------------
# Branch 2: MoCo-style queue InfoNCE (cross-entropy against label 0)
#   grid = (anchor blocks, K tiles), online logsumexp over K
# ----------------------------------------------------------------------------
def _supcon_queue_kernel(q_ref, k_ref, queue_ref, out_ref,
                         m_sc, l_sc, lpos_sc, *, K, TK, needs_col_mask):
    kv = pl.program_id(1)

    @pl.when(kv == 0)
    def _init():
        # q was pre-scaled by 1/temperature, so l_pos is already scaled.
        lp = jnp.sum(q_ref[...] * k_ref[...], axis=1, keepdims=True)     # (TB, 1)
        lpos_sc[...] = lp
        m_sc[...] = lp                     # running max, seeded with the positive
        l_sc[...] = jnp.ones_like(lp)      # exp(l_pos - m) == 1

    l_neg = jax.lax.dot_general(q_ref[...], queue_ref[...],
                                (((1,), (1,)), ((), ())),
                                preferred_element_type=jnp.float32)      # (TB, TK)
    if needs_col_mask:                    # only traced when K was padded
        col = kv * TK + jax.lax.broadcasted_iota(jnp.int32, l_neg.shape, 1)
        l_neg = jnp.where(col < K, l_neg, _NEG_BIG)

    m_prev = m_sc[...]
    m_new = jnp.maximum(m_prev, jnp.max(l_neg, axis=1, keepdims=True))
    alpha = jnp.exp(m_prev - m_new)
    l_sc[...] = l_sc[...] * alpha + jnp.sum(jnp.exp(l_neg - m_new),
                                            axis=1, keepdims=True)
    m_sc[...] = m_new

    @pl.when(kv == pl.num_programs(1) - 1)
    def _finalize():
        lse = m_sc[...] + jnp.log(l_sc[...])
        out_ref[...] = lse - lpos_sc[...]          # CE with target class 0


def supcon_loss_queue(features, batch_size, temperature=TEMPERATURE):
    B = int(batch_size)
    total, C = features.shape
    K = total - 2 * B
    inv_temp = jnp.float32(1.0 / float(temperature))

    f32 = features.astype(jnp.float32)
    q = f32[:B] * inv_temp               # fold 1/T into q: scales l_pos and l_neg
    k = f32[B:2 * B]
    queue = f32[2 * B:]

    TK, K_pad = _tile(K, 1024)
    if K_pad != K:
        queue = jnp.pad(queue, ((0, K_pad - K), (0, 0)))
    KT = K_pad // TK
    TB = _anchor_tile(B)
    BT = B // TB

    kernel = functools.partial(_supcon_queue_kernel, K=K, TK=TK,
                               needs_col_mask=(K_pad != K))
    per_anchor = pl.pallas_call(
        kernel,
        out_shape=jax.ShapeDtypeStruct((B, 1), jnp.float32),
        grid_spec=pltpu.PrefetchScalarGridSpec(
            num_scalar_prefetch=0,
            grid=(BT, KT),
            in_specs=[
                pl.BlockSpec((TB, C), lambda b, kv: (b, 0)),   # q (resident)
                pl.BlockSpec((TB, C), lambda b, kv: (b, 0)),   # k (resident)
                pl.BlockSpec((TK, C), lambda b, kv: (kv, 0)),  # queue tiles
            ],
            out_specs=pl.BlockSpec((TB, 1), lambda b, kv: (b, 0)),
            scratch_shapes=[pltpu.VMEM((TB, 1), jnp.float32),   # running max
                            pltpu.VMEM((TB, 1), jnp.float32),   # running sum-exp
                            pltpu.VMEM((TB, 1), jnp.float32)]),  # l_pos
        compiler_params=pltpu.CompilerParams(
            dimension_semantics=("parallel", "arbitrary"),
            vmem_limit_bytes=_VMEM_LIMIT),
    )(q, k, queue)
    return jnp.mean(per_anchor)


# ----------------------------------------------------------------------------
# Pure-JAX references (mirror of the PyTorch forward, for the sanity check)
# ----------------------------------------------------------------------------
def _ref_masked(features, mask, dsc, dtc, B, temp, base_temp, D):
    adc = (features[:B] @ features.T) / temp
    logits = adc - jnp.max(adc, axis=1, keepdims=True)
    lm = jnp.ones_like(mask)
    lm = lm.at[jnp.arange(B), jnp.arange(B)].set(0.0)
    m = mask * lm
    el = jnp.exp(logits)
    dt = dtc.reshape(-1)
    w = dsc[:B]
    new_lp = jnp.zeros((B,), jnp.float32)
    for d in range(D):
        dm = (dt == d).astype(jnp.float32)
        ne_po = jnp.sum(el * dm[None, :], axis=1, keepdims=True)
        adom = (dt[:B] == d)[:, None]
        tmp = jnp.where(adom, logits - jnp.log(ne_po + 1e-8),
                        logits - jnp.log(ne_po + el + 1e-12))
        tmp = tmp * w[:, d:d + 1]
        new_lp = new_lp + jnp.sum(m * tmp, axis=1) / jnp.sum(m, axis=1)
    return jnp.mean(-(temp / base_temp) * new_lp)


def _ref_queue(features, B, temp):
    q, k, queue = features[:B], features[B:2 * B], features[2 * B:]
    l_pos = jnp.sum(q * k, axis=1, keepdims=True)
    l_neg = q @ queue.T
    logits = jnp.concatenate([l_pos, l_neg], axis=1) / temp
    lse = jax.scipy.special.logsumexp(logits, axis=1)
    return jnp.mean(lse - logits[:, 0])


if __name__ == "__main__":
    key = jax.random.PRNGKey(0)
    k1, k2, k3, k4, k5 = jax.random.split(key, 5)

    # masked branch inputs: B anchors, N total contrast samples, C feature dim
    B, N, C, D = 4, 16, 32, DOMAIN_NUMBER
    features = jax.random.normal(k1, (N, C), jnp.float32)
    features = features / jnp.linalg.norm(features, axis=1, keepdims=True)
    mask = (jax.random.uniform(k2, (B, N)) > 0.4).astype(jnp.float32)
    mask = mask.at[:, N - 1].set(1.0)  # guarantee every row has a positive
    domain_score_cont = jax.nn.softmax(jax.random.normal(k3, (N, D)), axis=-1)
    domain_target_cont = jax.random.randint(k4, (N, 1), 0, D, jnp.int32)

    loss1 = supcon_loss_masked(features, mask, domain_score_cont,
                               domain_target_cont, batch_size=B)
    loss1 = jax.block_until_ready(loss1)
    ref1 = _ref_masked(features, mask, domain_score_cont, domain_target_cont,
                       B, TEMPERATURE, BASE_TEMPERATURE, D)
    np.testing.assert_allclose(np.asarray(loss1), np.asarray(ref1),
                               rtol=2e-2, atol=2e-2)

    # queue branch inputs: features = [q (B); k (B); queue (K)]
    Kq = 8
    features_q = jax.random.normal(k5, (2 * B + Kq, C), jnp.float32)
    features_q = features_q / jnp.linalg.norm(features_q, axis=1, keepdims=True)
    loss2 = supcon_loss_queue(features_q, batch_size=B)
    loss2 = jax.block_until_ready(loss2)
    ref2 = _ref_queue(features_q, B, TEMPERATURE)
    np.testing.assert_allclose(np.asarray(loss2), np.asarray(ref2),
                               rtol=2e-2, atol=2e-2)

    print("KERNEL_OK")
</pallas_src>

<mosaic_0001>
module attributes {stable_mosaic.version = 11 : i64} {
  func.func @_supcon_masked_kernel(%arg0: i32, %arg1: i32, %arg2: i32, %arg3: memref<4x32xf32, #tpu.memory_space<vmem>>, %arg4: memref<16x32xf32, #tpu.memory_space<vmem>>, %arg5: memref<4x16xf32, #tpu.memory_space<vmem>>, %arg6: memref<16x7xf32, #tpu.memory_space<vmem>>, %arg7: memref<4x7xf32, #tpu.memory_space<vmem>>, %arg8: memref<4x1xi32, #tpu.memory_space<vmem>>, %arg9: memref<4x1xf32, #tpu.memory_space<vmem>>, %arg10: memref<4x1xf32, #tpu.memory_space<vmem>>, %arg11: memref<4x7xf32, #tpu.memory_space<vmem>>, %arg12: memref<4x1xf32, #tpu.memory_space<vmem>>, %arg13: memref<4x7xf32, #tpu.memory_space<vmem>>, %arg14: memref<4x1xf32, #tpu.memory_space<vmem>>) attributes {dimension_semantics = [#tpu.dimension_semantics<parallel>, #tpu.dimension_semantics<arbitrary>, #tpu.dimension_semantics<arbitrary>], iteration_bounds = array<i64: 1, 2, 1>, scalar_prefetch = 0 : i64, scratch_operands = 5 : i64, tpu.core_type = #tpu.core_type<tc>, window_params = [{transform_indices = @transform_0, window_bounds = array<i64: 4, 32>}, {transform_indices = @transform_1, window_bounds = array<i64: 16, 32>}, {transform_indices = @transform_2, window_bounds = array<i64: 4, 16>}, {transform_indices = @transform_3, window_bounds = array<i64: 16, 7>}, {transform_indices = @transform_4, window_bounds = array<i64: 4, 7>}, {transform_indices = @transform_5, window_bounds = array<i64: 4, 1>}, {transform_indices = @transform_6, window_bounds = array<i64: 4, 1>}]} {
    %c0_i32 = arith.constant 0 : i32
    %0 = arith.cmpi eq, %arg1, %c0_i32 : i32
    %c0_i32_0 = arith.constant 0 : i32
    %1 = arith.cmpi eq, %arg2, %c0_i32_0 : i32
    %2 = arith.andi %0, %1 : i1
    %3 = arith.extui %2 : i1 to i32
    %c0_i32_1 = arith.constant 0 : i32
    %4 = arith.cmpi ne, %3, %c0_i32_1 : i32
    scf.if %4 {
      %cst_11 = arith.constant -1.000000e+30 : f32
      %19 = vector.broadcast %cst_11 : f32 to vector<4x1xf32>
      %c0_12 = arith.constant 0 : index
      %c0_13 = arith.constant 0 : index
      %20 = vector.load %arg10[%c0_12, %c0_13] : memref<4x1xf32, #tpu.memory_space<vmem>>, vector<4x1xf32>
      tpu.vector_store %arg10[%c0_12, %c0_13], %19 {strides = array<i32>} : memref<4x1xf32, #tpu.memory_space<vmem>>, vector<4x1xf32>,
      %cst_14 = arith.constant 0.000000e+00 : f32
      %21 = vector.broadcast %cst_14 : f32 to vector<4x7xf32>
      %c0_15 = arith.constant 0 : index
      %c0_16 = arith.constant 0 : index
      %22 = vector.load %arg11[%c0_15, %c0_16] : memref<4x7xf32, #tpu.memory_space<vmem>>, vector<4x7xf32>
      tpu.vector_store %arg11[%c0_15, %c0_16], %21 {strides = array<i32>} : memref<4x7xf32, #tpu.memory_space<vmem>>, vector<4x7xf32>,
      %cst_17 = arith.constant 0.000000e+00 : f32
      %23 = vector.broadcast %cst_17 : f32 to vector<4x1xf32>
      %c0_18 = arith.constant 0 : index
      %c0_19 = arith.constant 0 : index
      %24 = vector.load %arg12[%c0_18, %c0_19] : memref<4x1xf32, #tpu.memory_space<vmem>>, vector<4x1xf32>
      tpu.vector_store %arg12[%c0_18, %c0_19], %23 {strides = array<i32>} : memref<4x1xf32, #tpu.memory_space<vmem>>, vector<4x1xf32>,
      %cst_20 = arith.constant 0.000000e+00 : f32
      %25 = vector.broadcast %cst_20 : f32 to vector<4x7xf32>
      %c0_21 = arith.constant 0 : index
      %c0_22 = arith.constant 0 : index
      %26 = vector.load %arg13[%c0_21, %c0_22] : memref<4x7xf32, #tpu.memory_space<vmem>>, vector<4x7xf32>
      tpu.vector_store %arg13[%c0_21, %c0_22], %25 {strides = array<i32>} : memref<4x7xf32, #tpu.memory_space<vmem>>, vector<4x7xf32>,
      %cst_23 = arith.constant 0.000000e+00 : f32
      %27 = vector.broadcast %cst_23 : f32 to vector<4x1xf32>
      %c0_24 = arith.constant 0 : index
      %c0_25 = arith.constant 0 : index
      %28 = vector.load %arg14[%c0_24, %c0_25] : memref<4x1xf32, #tpu.memory_space<vmem>>, vector<4x1xf32>
      tpu.vector_store %arg14[%c0_24, %c0_25], %27 {strides = array<i32>} : memref<4x1xf32, #tpu.memory_space<vmem>>, vector<4x1xf32>,
      %cst_26 = arith.constant 0.000000e+00 : f32
      %29 = vector.broadcast %cst_26 : f32 to vector<4x1xf32>
      %c0_27 = arith.constant 0 : index
      %c0_28 = arith.constant 0 : index
      %30 = vector.load %arg9[%c0_27, %c0_28] : memref<4x1xf32, #tpu.memory_space<vmem>>, vector<4x1xf32>
      tpu.vector_store %arg9[%c0_27, %c0_28], %29 {strides = array<i32>} : memref<4x1xf32, #tpu.memory_space<vmem>>, vector<4x1xf32>,
    } else {
    }
    %c0 = arith.constant 0 : index
    %c0_2 = arith.constant 0 : index
    %5 = vector.load %arg3[%c0, %c0_2] : memref<4x32xf32, #tpu.memory_space<vmem>>, vector<4x32xf32>
    %c0_3 = arith.constant 0 : index
    %c0_4 = arith.constant 0 : index
    %6 = vector.load %arg4[%c0_3, %c0_4] : memref<16x32xf32, #tpu.memory_space<vmem>>, vector<16x32xf32>
    %cst = arith.constant dense<0.000000e+00> : vector<4x16xf32>
    %7 = tpu.matmul %5, %6, %cst {dimension_numbers = #tpu.dot_dimension_numbers<[1], [1], [0], [0], [0, 0, 1, 0], [], []>} : vector<4x32xf32>, vector<16x32xf32>, vector<4x16xf32> -> vector<4x16xf32>
    %c0_i32_5 = arith.constant 0 : i32
    %8 = arith.cmpi eq, %arg1, %c0_i32_5 : i32
    %9 = arith.extui %8 : i1 to i32
    %c0_i32_6 = arith.constant 0 : i32
    %10 = arith.cmpi ne, %9, %c0_i32_6 : i32
    scf.if %10 {
      %c0_11 = arith.constant 0 : index
      %c0_12 = arith.constant 0 : index
      %19 = vector.load %arg10[%c0_11, %c0_12] : memref<4x1xf32, #tpu.memory_space<vmem>>, vector<4x1xf32>
      %cst_13 = arith.constant dense<0xFF800000> : vector<4xf32>
      %20 = vector.multi_reduction <maximumf>, %7, %cst_13 [1] : vector<4x16xf32> to vector<4xf32>
      %21 = vector.shape_cast %20 : vector<4xf32> to vector<4x1xf32>
      %22 = arith.maximumf %19, %21 : vector<4x1xf32>
      %23 = arith.subf %19, %22 : vector<4x1xf32>
      %24 = math.exp %23 : vector<4x1xf32>
      %25 = vector.broadcast %22 : vector<4x1xf32> to vector<4x16xf32>
      %26 = arith.subf %7, %25 : vector<4x16xf32>
      %27 = math.exp %26 : vector<4x16xf32>
      %c0_14 = arith.constant 0 : index
      %c0_15 = arith.constant 0 : index
      %28 = vector.load %arg6[%c0_14, %c0_15] : memref<16x7xf32, #tpu.memory_space<vmem>>, vector<16x7xf32>
      %cst_16 = arith.constant dense<0.000000e+00> : vector<4x7xf32>
      %29 = tpu.matmul %27, %28, %cst_16 {dimension_numbers = #tpu.dot_dimension_numbers<[1], [0], [0], [1], [0, 0, 1, 1], [], []>} : vector<4x16xf32>, vector<16x7xf32>, vector<4x7xf32> -> vector<4x7xf32>
      %c0_17 = arith.constant 0 : index
      %c0_18 = arith.constant 0 : index
      %30 = vector.load %arg11[%c0_17, %c0_18] : memref<4x7xf32, #tpu.memory_space<vmem>>, vector<4x7xf32>
      %31 = vector.broadcast %24 : vector<4x1xf32> to vector<4x7xf32>
      %32 = arith.mulf %30, %31 : vector<4x7xf32>
      %33 = arith.addf %32, %29 : vector<4x7xf32>
      %c0_19 = arith.constant 0 : index
      %c0_20 = arith.constant 0 : index
      %34 = vector.load %arg11[%c0_19, %c0_20] : memref<4x7xf32, #tpu.memory_space<vmem>>, vector<4x7xf32>
      tpu.vector_store %arg11[%c0_19, %c0_20], %33 {strides = array<i32>} : memref<4x7xf32, #tpu.memory_space<vmem>>, vector<4x7xf32>,
      %c0_21 = arith.constant 0 : index
      %c0_22 = arith.constant 0 : index
      %35 = vector.load %arg10[%c0_21, %c0_22] : memref<4x1xf32, #tpu.memory_space<vmem>>, vector<4x1xf32>
      tpu.vector_store %arg10[%c0_21, %c0_22], %22 {strides = array<i32>} : memref<4x1xf32, #tpu.memory_space<vmem>>, vector<4x1xf32>,
    } else {
    }
    %c1_i32 = arith.constant 1 : i32
    %11 = arith.cmpi eq, %arg1, %c1_i32 : i32
    %12 = arith.extui %11 : i1 to i32
    %c0_i32_7 = arith.constant 0 : i32
    %13 = arith.cmpi ne, %12, %c0_i32_7 : i32
    scf.if %13 {
      %c0_11 = arith.constant 0 : index
      %c0_12 = arith.constant 0 : index
      %19 = vector.load %arg10[%c0_11, %c0_12] : memref<4x1xf32, #tpu.memory_space<vmem>>, vector<4x1xf32>
      %20 = vector.broadcast %19 : vector<4x1xf32> to vector<4x16xf32>
      %21 = arith.subf %7, %20 : vector<4x16xf32>
      %22 = math.exp %21 : vector<4x16xf32>
      %c0_13 = arith.constant 0 : index
      %c0_14 = arith.constant 0 : index
      %23 = vector.load %arg5[%c0_13, %c0_14] : memref<4x16xf32, #tpu.memory_space<vmem>>, vector<4x16xf32>
      %c0_15 = arith.constant 0 : index
      %c0_16 = arith.constant 0 : index
      %24 = vector.load %arg12[%c0_15, %c0_16] : memref<4x1xf32, #tpu.memory_space<vmem>>, vector<4x1xf32>
      %25 = arith.mulf %23, %21 : vector<4x16xf32>
      %cst_17 = arith.constant dense<0.000000e+00> : vector<4xf32>
      %26 = vector.multi_reduction <add>, %25, %cst_17 [1] : vector<4x16xf32> to vector<4xf32>
      %27 = vector.shape_cast %26 : vector<4xf32> to vector<4x1xf32>
      %28 = arith.addf %24, %27 : vector<4x1xf32>
      %c0_18 = arith.constant 0 : index
      %c0_19 = arith.constant 0 : index
      %29 = vector.load %arg12[%c0_18, %c0_19] : memref<4x1xf32, #tpu.memory_space<vmem>>, vector<4x1xf32>
      tpu.vector_store %arg12[%c0_18, %c0_19], %28 {strides = array<i32>} : memref<4x1xf32, #tpu.memory_space<vmem>>, vector<4x1xf32>,
      %c0_20 = arith.constant 0 : index
      %c0_21 = arith.constant 0 : index
      %30 = vector.load %arg14[%c0_20, %c0_21] : memref<4x1xf32, #tpu.memory_space<vmem>>, vector<4x1xf32>
      %cst_22 = arith.constant dense<0.000000e+00> : vector<4xf32>
      %31 = vector.multi_reduction <add>, %23, %cst_22 [1] : vector<4x16xf32> to vector<4xf32>
      %32 = vector.shape_cast %31 : vector<4xf32> to vector<4x1xf32>
      %33 = arith.addf %30, %32 : vector<4x1xf32>
      %c0_23 = arith.constant 0 : index
      %c0_24 = arith.constant 0 : index
      %34 = vector.load %arg14[%c0_23, %c0_24] : memref<4x1xf32, #tpu.memory_space<vmem>>, vector<4x1xf32>
      tpu.vector_store %arg14[%c0_23, %c0_24], %33 {strides = array<i32>} : memref<4x1xf32, #tpu.memory_space<vmem>>, vector<4x1xf32>,
      %cst_25 = arith.constant 9.99999996E-13 : f32
      %35 = vector.broadcast %cst_25 : f32 to vector<4x16xf32>
      %36 = arith.addf %22, %35 : vector<4x16xf32>
      %c0_26 = arith.constant 0 : index
      %c0_27 = arith.constant 0 : index
      %37 = vector.load %arg11[%c0_26, %c0_27] : memref<4x7xf32, #tpu.memory_space<vmem>>, vector<4x7xf32>
      %c0_28 = arith.constant 0 : index
      %c0_29 = arith.constant 0 : index
      %38 = vector.load %arg13[%c0_28, %c0_29] : memref<4x7xf32, #tpu.memory_space<vmem>>, vector<4x1xf32>
      %39 = vector.extract_strided_slice %37 {offsets = [0, 0], sizes = [4, 1], strides = [1, 1]} : vector<4x7xf32> to vector<4x1xf32>
      %40 = vector.broadcast %39 : vector<4x1xf32> to vector<4x16xf32>
      %41 = arith.addf %40, %36 : vector<4x16xf32>
      %42 = math.log %41 : vector<4x16xf32>
      %43 = arith.mulf %23, %42 : vector<4x16xf32>
      %cst_30 = arith.constant dense<0.000000e+00> : vector<4xf32>
      %44 = vector.multi_reduction <add>, %43, %cst_30 [1] : vector<4x16xf32> to vector<4xf32>
      %45 = vector.shape_cast %44 : vector<4xf32> to vector<4x1xf32>
      %46 = arith.addf %38, %45 : vector<4x1xf32>
      %c0_31 = arith.constant 0 : index
      %c0_32 = arith.constant 0 : index
      %47 = vector.load %arg13[%c0_31, %c0_32] : memref<4x7xf32, #tpu.memory_space<vmem>>, vector<4x1xf32>
      tpu.vector_store %arg13[%c0_31, %c0_32], %46 {strides = array<i32>} : memref<4x7xf32, #tpu.memory_space<vmem>>, vector<4x1xf32>,
      %c0_33 = arith.constant 0 : index
      %c1 = arith.constant 1 : index
      %48 = vector.load %arg13[%c0_33, %c1] : memref<4x7xf32, #tpu.memory_space<vmem>>, vector<4x1xf32>
      %49 = vector.extract_strided_slice %37 {offsets = [0, 1], sizes = [4, 1], strides = [1, 1]} : vector<4x7xf32> to vector<4x1xf32>
      %50 = vector.broadcast %49 : vector<4x1xf32> to vector<4x16xf32>
      %51 = arith.addf %50, %36 : vector<4x16xf32>
      %52 = math.log %51 : vector<4x16xf32>
      %53 = arith.mulf %23, %52 : vector<4x16xf32>
      %cst_34 = arith.constant dense<0.000000e+00> : vector<4xf32>
      %54 = vector.multi_reduction <add>, %53, %cst_34 [1] : vector<4x16xf32> to vector<4xf32>
      %55 = vector.shape_cast %54 : vector<4xf32> to vector<4x1xf32>
      %56 = arith.addf %48, %55 : vector<4x1xf32>
      %c0_35 = arith.constant 0 : index
      %c1_36 = arith.constant 1 : index
      %57 = vector.load %arg13[%c0_35, %c1_36] : memref<4x7xf32, #tpu.memory_space<vmem>>, vector<4x1xf32>
      tpu.vector_store %arg13[%c0_35, %c1_36], %56 {strides = array<i32>} : memref<4x7xf32, #tpu.memory_space<vmem>>, vector<4x1xf32>,
      %c0_37 = arith.constant 0 : index
      %c2 = arith.constant 2 : index
      %58 = vector.load %arg13[%c0_37, %c2] : memref<4x7xf32, #tpu.memory_space<vmem>>, vector<4x1xf32>
      %59 = vector.extract_strided_slice %37 {offsets = [0, 2], sizes = [4, 1], strides = [1, 1]} : vector<4x7xf32> to vector<4x1xf32>
      %60 = vector.broadcast %59 : vector<4x1xf32> to vector<4x16xf32>
      %61 = arith.addf %60, %36 : vector<4x16xf32>
      %62 = math.log %61 : vector<4x16xf32>
      %63 = arith.mulf %23, %62 : vector<4x16xf32>
      %cst_38 = arith.constant dense<0.000000e+00> : vector<4xf32>
      %64 = vector.multi_reduction <add>, %63, %cst_38 [1] : vector<4x16xf32> to vector<4xf32>
      %65 = vector.shape_cast %64 : vector<4xf32> to vector<4x1xf32>
      %66 = arith.addf %58, %65 : vector<4x1xf32>
      %c0_39 = arith.constant 0 : index
      %c2_40 = arith.constant 2 : index
      %67 = vector.load %arg13[%c0_39, %c2_40] : memref<4x7xf32, #tpu.memory_space<vmem>>, vector<4x1xf32>
      tpu.vector_store %arg13[%c0_39, %c2_40], %66 {strides = array<i32>} : memref<4x7xf32, #tpu.memory_space<vmem>>, vector<4x1xf32>,
      %c0_41 = arith.constant 0 : index
      %c3 = arith.constant 3 : index
      %68 = vector.load %arg13[%c0_41, %c3] : memref<4x7xf32, #tpu.memory_space<vmem>>, vector<4x1xf32>
      %69 = vector.extract_strided_slice %37 {offsets = [0, 3], sizes = [4, 1], strides = [1, 1]} : vector<4x7xf32> to vector<4x1xf32>
      %70 = vector.broadcast %69 : vector<4x1xf32> to vector<4x16xf32>
      %71 = arith.addf %70, %36 : vector<4x16xf32>
      %72 = math.log %71 : vector<4x16xf32>
      %73 = arith.mulf %23, %72 : vector<4x16xf32>
      %cst_42 = arith.constant dense<0.000000e+00> : vector<4xf32>
      %74 = vector.multi_reduction <add>, %73, %cst_42 [1] : vector<4x16xf32> to vector<4xf32>
      %75 = vector.shape_cast %74 : vector<4xf32> to vector<4x1xf32>
      %76 = arith.addf %68, %75 : vector<4x1xf32>
      %c0_43 = arith.constant 0 : index
      %c3_44 = arith.constant 3 : index
      %77 = vector.load %arg13[%c0_43, %c3_44] : memref<4x7xf32, #tpu.memory_space<vmem>>, vector<4x1xf32>
      tpu.vector_store %arg13[%c0_43, %c3_44], %76 {strides = array<i32>} : memref<4x7xf32, #tpu.memory_space<vmem>>, vector<4x1xf32>,
      %c0_45 = arith.constant 0 : index
      %c4 = arith.constant 4 : index
      %78 = vector.load %arg13[%c0_45, %c4] : memref<4x7xf32, #tpu.memory_space<vmem>>, vector<4x1xf32>
      %79 = vector.extract_strided_slice %37 {offsets = [0, 4], sizes = [4, 1], strides = [1, 1]} : vector<4x7xf32> to vector<4x1xf32>
      %80 = vector.broadcast %79 : vector<4x1xf32> to vector<4x16xf32>
      %81 = arith.addf %80, %36 : vector<4x16xf32>
      %82 = math.log %81 : vector<4x16xf32>
      %83 = arith.mulf %23, %82 : vector<4x16xf32>
      %cst_46 = arith.constant dense<0.000000e+00> : vector<4xf32>
      %84 = vector.multi_reduction <add>, %83, %cst_46 [1] : vector<4x16xf32> to vector<4xf32>
      %85 = vector.shape_cast %84 : vector<4xf32> to vector<4x1xf32>
      %86 = arith.addf %78, %85 : vector<4x1xf32>
      %c0_47 = arith.constant 0 : index
      %c4_48 = arith.constant 4 : index
      %87 = vector.load %arg13[%c0_47, %c4_48] : memref<4x7xf32, #tpu.memory_space<vmem>>, vector<4x1xf32>
      tpu.vector_store %arg13[%c0_47, %c4_48], %86 {strides = array<i32>} : memref<4x7xf32, #tpu.memory_space<vmem>>, vector<4x1xf32>,
      %c0_49 = arith.constant 0 : index
      %c5 = arith.constant 5 : index
      %88 = vector.load %arg13[%c0_49, %c5] : memref<4x7xf32, #tpu.memory_space<vmem>>, vector<4x1xf32>
      %89 = vector.extract_strided_slice %37 {offsets = [0, 5], sizes = [4, 1], strides = [1, 1]} : vector<4x7xf32> to vector<4x1xf32>
      %90 = vector.broadcast %89 : vector<4x1xf32> to vector<4x16xf32>
      %91 = arith.addf %90, %36 : vector<4x16xf32>
      %92 = math.log %91 : vector<4x16xf32>
      %93 = arith.mulf %23, %92 : vector<4x16xf32>
      %cst_50 = arith.constant dense<0.000000e+00> : vector<4xf32>
      %94 = vector.multi_reduction <add>, %93, %cst_50 [1] : vector<4x16xf32> to vector<4xf32>
      %95 = vector.shape_cast %94 : vector<4xf32> to vector<4x1xf32>
      %96 = arith.addf %88, %95 : vector<4x1xf32>
      %c0_51 = arith.constant 0 : index
      %c5_52 = arith.constant 5 : index
      %97 = vector.load %arg13[%c0_51, %c5_52] : memref<4x7xf32, #tpu.memory_space<vmem>>, vector<4x1xf32>
      tpu.vector_store %arg13[%c0_51, %c5_52], %96 {strides = array<i32>} : memref<4x7xf32, #tpu.memory_space<vmem>>, vector<4x1xf32>,
      %c0_53 = arith.constant 0 : index
      %c6 = arith.constant 6 : index
      %98 = vector.load %arg13[%c0_53, %c6] : memref<4x7xf32, #tpu.memory_space<vmem>>, vector<4x1xf32>
      %99 = vector.extract_strided_slice %37 {offsets = [0, 6], sizes = [4, 1], strides = [1, 1]} : vector<4x7xf32> to vector<4x1xf32>
      %100 = vector.broadcast %99 : vector<4x1xf32> to vector<4x16xf32>
      %101 = arith.addf %100, %36 : vector<4x16xf32>
      %102 = math.log %101 : vector<4x16xf32>
      %103 = arith.mulf %23, %102 : vector<4x16xf32>
      %cst_54 = arith.constant dense<0.000000e+00> : vector<4xf32>
      %104 = vector.multi_reduction <add>, %103, %cst_54 [1] : vector<4x16xf32> to vector<4xf32>
      %105 = vector.shape_cast %104 : vector<4xf32> to vector<4x1xf32>
      %106 = arith.addf %98, %105 : vector<4x1xf32>
      %c0_55 = arith.constant 0 : index
      %c6_56 = arith.constant 6 : index
      %107 = vector.load %arg13[%c0_55, %c6_56] : memref<4x7xf32, #tpu.memory_space<vmem>>, vector<4x1xf32>
      tpu.vector_store %arg13[%c0_55, %c6_56], %106 {strides = array<i32>} : memref<4x7xf32, #tpu.memory_space<vmem>>, vector<4x1xf32>,
    } else {
    }
    %c1_i32_8 = arith.constant 1 : i32
    %14 = arith.cmpi eq, %arg1, %c1_i32_8 : i32
    %c0_i32_9 = arith.constant 0 : i32
    %15 = arith.cmpi eq, %arg2, %c0_i32_9 : i32
    %16 = arith.andi %14, %15 : i1
    %17 = arith.extui %16 : i1 to i32
    %c0_i32_10 = arith.constant 0 : i32
    %18 = arith.cmpi ne, %17, %c0_i32_10 : i32
    scf.if %18 {
      %c0_11 = arith.constant 0 : index
      %c0_12 = arith.constant 0 : index
      %19 = vector.load %arg12[%c0_11, %c0_12] : memref<4x1xf32, #tpu.memory_space<vmem>>, vector<4x1xf32>
      %c0_13 = arith.constant 0 : index
      %c0_14 = arith.constant 0 : index
      %20 = vector.load %arg14[%c0_13, %c0_14] : memref<4x1xf32, #tpu.memory_space<vmem>>, vector<4x1xf32>
      %c0_15 = arith.constant 0 : index
      %c0_16 = arith.constant 0 : index
      %21 = vector.load %arg13[%c0_15, %c0_16] : memref<4x7xf32, #tpu.memory_space<vmem>>, vector<4x7xf32>
      %c0_17 = arith.constant 0 : index
      %c0_18 = arith.constant 0 : index
      %22 = vector.load %arg11[%c0_17, %c0_18] : memref<4x7xf32, #tpu.memory_space<vmem>>, vector<4x7xf32>
      %c0_19 = arith.constant 0 : index
      %c0_20 = arith.constant 0 : index
      %23 = vector.load %arg8[%c0_19, %c0_20] : memref<4x1xi32, #tpu.memory_space<vmem>>, vector<4x1xi32>
      %c0_21 = arith.constant 0 : index
      %c0_22 = arith.constant 0 : index
      %24 = vector.load %arg7[%c0_21, %c0_22] : memref<4x7xf32, #tpu.memory_space<vmem>>, vector<4x7xf32>
      %cst_23 = arith.constant 0.000000e+00 : f32
      %25 = vector.broadcast %cst_23 : f32 to vector<4x1xf32>
      %26 = vector.extract_strided_slice %22 {offsets = [0, 0], sizes = [4, 1], strides = [1, 1]} : vector<4x7xf32> to vector<4x1xf32>
      %cst_24 = arith.constant 9.99999993E-9 : f32
      %27 = vector.broadcast %cst_24 : f32 to vector<4x1xf32>
      %28 = arith.addf %26, %27 : vector<4x1xf32>
      %29 = math.log %28 : vector<4x1xf32>
      %30 = arith.mulf %20, %29 : vector<4x1xf32>
      %31 = arith.subf %19, %30 : vector<4x1xf32>
      %32 = vector.extract_strided_slice %21 {offsets = [0, 0], sizes = [4, 1], strides = [1, 1]} : vector<4x7xf32> to vector<4x1xf32>
      %33 = arith.subf %19, %32 : vector<4x1xf32>
      %34 = vector.extract_strided_slice %24 {offsets = [0, 0], sizes = [4, 1], strides = [1, 1]} : vector<4x7xf32> to vector<4x1xf32>
      %c0_i32_25 = arith.constant 0 : i32
      %35 = vector.broadcast %c0_i32_25 : i32 to vector<4x1xi32>
      %36 = arith.cmpi eq, %23, %35 : vector<4x1xi32>
      %37 = arith.select %36, %31, %33 : vector<4x1xi1>, vector<4x1xf32>
      %38 = arith.mulf %34, %37 : vector<4x1xf32>
      %39 = arith.addf %25, %38 : vector<4x1xf32>
      %40 = vector.extract_strided_slice %22 {offsets = [0, 1], sizes = [4, 1], strides = [1, 1]} : vector<4x7xf32> to vector<4x1xf32>
      %cst_26 = arith.constant 9.99999993E-9 : f32
      %41 = vector.broadcast %cst_26 : f32 to vector<4x1xf32>
      %42 = arith.addf %40, %41 : vector<4x1xf32>
      %43 = math.log %42 : vector<4x1xf32>
      %44 = arith.mulf %20, %43 : vector<4x1xf32>
      %45 = arith.subf %19, %44 : vector<4x1xf32>
      %46 = vector.extract_strided_slice %21 {offsets = [0, 1], sizes = [4, 1], strides = [1, 1]} : vector<4x7xf32> to vector<4x1xf32>
      %47 = arith.subf %19, %46 : vector<4x1xf32>
      %48 = vector.extract_strided_slice %24 {offsets = [0, 1], sizes = [4, 1], strides = [1, 1]} : vector<4x7xf32> to vector<4x1xf32>
      %c1_i32_27 = arith.constant 1 : i32
      %49 = vector.broadcast %c1_i32_27 : i32 to vector<4x1xi32>
      %50 = arith.cmpi eq, %23, %49 : vector<4x1xi32>
      %51 = arith.select %50, %45, %47 : vector<4x1xi1>, vector<4x1xf32>
      %52 = arith.mulf %48, %51 : vector<4x1xf32>
      %53 = arith.addf %39, %52 : vector<4x1xf32>
      %54 = vector.extract_strided_slice %22 {offsets = [0, 2], sizes = [4, 1], strides = [1, 1]} : vector<4x7xf32> to vector<4x1xf32>
      %cst_28 = arith.constant 9.99999993E-9 : f32
      %55 = vector.broadcast %cst_28 : f32 to vector<4x1xf32>
      %56 = arith.addf %54, %55 : vector<4x1xf32>
      %57 = math.log %56 : vector<4x1xf32>
      %58 = arith.mulf %20, %57 : vector<4x1xf32>
      %59 = arith.subf %19, %58 : vector<4x1xf32>
      %60 = vector.extract_strided_slice %21 {offsets = [0, 2], sizes = [4, 1], strides = [1, 1]} : vector<4x7xf32> to vector<4x1xf32>
      %61 = arith.subf %19, %60 : vector<4x1xf32>
      %62 = vector.extract_strided_slice %24 {offsets = [0, 2], sizes = [4, 1], strides = [1, 1]} : vector<4x7xf32> to vector<4x1xf32>
      %c2_i32 = arith.constant 2 : i32
      %63 = vector.broadcast %c2_i32 : i32 to vector<4x1xi32>
      %64 = arith.cmpi eq, %23, %63 : vector<4x1xi32>
      %65 = arith.select %64, %59, %61 : vector<4x1xi1>, vector<4x1xf32>
      %66 = arith.mulf %62, %65 : vector<4x1xf32>
      %67 = arith.addf %53, %66 : vector<4x1xf32>
      %68 = vector.extract_strided_slice %22 {offsets = [0, 3], sizes = [4, 1], strides = [1, 1]} : vector<4x7xf32> to vector<4x1xf32>
      %cst_29 = arith.constant 9.99999993E-9 : f32
      %69 = vector.broadcast %cst_29 : f32 to vector<4x1xf32>
      %70 = arith.addf %68, %69 : vector<4x1xf32>
      %71 = math.log %70 : vector<4x1xf32>
      %72 = arith.mulf %20, %71 : vector<4x1xf32>
      %73 = arith.subf %19, %72 : vector<4x1xf32>
      %74 = vector.extract_strided_slice %21 {offsets = [0, 3], sizes = [4, 1], strides = [1, 1]} : vector<4x7xf32> to vector<4x1xf32>
      %75 = arith.subf %19, %74 : vector<4x1xf32>
      %76 = vector.extract_strided_slice %24 {offsets = [0, 3], sizes = [4, 1], strides = [1, 1]} : vector<4x7xf32> to vector<4x1xf32>
      %c3_i32 = arith.constant 3 : i32
      %77 = vector.broadcast %c3_i32 : i32 to vector<4x1xi32>
      %78 = arith.cmpi eq, %23, %77 : vector<4x1xi32>
      %79 = arith.select %78, %73, %75 : vector<4x1xi1>, vector<4x1xf32>
      %80 = arith.mulf %76, %79 : vector<4x1xf32>
      %81 = arith.addf %67, %80 : vector<4x1xf32>
      %82 = vector.extract_strided_slice %22 {offsets = [0, 4], sizes = [4, 1], strides = [1, 1]} : vector<4x7xf32> to vector<4x1xf32>
      %cst_30 = arith.constant 9.99999993E-9 : f32
      %83 = vector.broadcast %cst_30 : f32 to vector<4x1xf32>
      %84 = arith.addf %82, %83 : vector<4x1xf32>
      %85 = math.log %84 : vector<4x1xf32>
      %86 = arith.mulf %20, %85 : vector<4x1xf32>
      %87 = arith.subf %19, %86 : vector<4x1xf32>
      %88 = vector.extract_strided_slice %21 {offsets = [0, 4], sizes = [4, 1], strides = [1, 1]} : vector<4x7xf32> to vector<4x1xf32>
      %89 = arith.subf %19, %88 : vector<4x1xf32>
      %90 = vector.extract_strided_slice %24 {offsets = [0, 4], sizes = [4, 1], strides = [1, 1]} : vector<4x7xf32> to vector<4x1xf32>
      %c4_i32 = arith.constant 4 : i32
      %91 = vector.broadcast %c4_i32 : i32 to vector<4x1xi32>
      %92 = arith.cmpi eq, %23, %91 : vector<4x1xi32>
      %93 = arith.select %92, %87, %89 : vector<4x1xi1>, vector<4x1xf32>
      %94 = arith.mulf %90, %93 : vector<4x1xf32>
      %95 = arith.addf %81, %94 : vector<4x1xf32>
      %96 = vector.extract_strided_slice %22 {offsets = [0, 5], sizes = [4, 1], strides = [1, 1]} : vector<4x7xf32> to vector<4x1xf32>
      %cst_31 = arith.constant 9.99999993E-9 : f32
      %97 = vector.broadcast %cst_31 : f32 to vector<4x1xf32>
      %98 = arith.addf %96, %97 : vector<4x1xf32>
      %99 = math.log %98 : vector<4x1xf32>
      %100 = arith.mulf %20, %99 : vector<4x1xf32>
      %101 = arith.subf %19, %100 : vector<4x1xf32>
      %102 = vector.extract_strided_slice %21 {offsets = [0, 5], sizes = [4, 1], strides = [1, 1]} : vector<4x7xf32> to vector<4x1xf32>
      %103 = arith.subf %19, %102 : vector<4x1xf32>
      %104 = vector.extract_strided_slice %24 {offsets = [0, 5], sizes = [4, 1], strides = [1, 1]} : vector<4x7xf32> to vector<4x1xf32>
      %c5_i32 = arith.constant 5 : i32
      %105 = vector.broadcast %c5_i32 : i32 to vector<4x1xi32>
      %106 = arith.cmpi eq, %23, %105 : vector<4x1xi32>
      %107 = arith.select %106, %101, %103 : vector<4x1xi1>, vector<4x1xf32>
      %108 = arith.mulf %104, %107 : vector<4x1xf32>
      %109 = arith.addf %95, %108 : vector<4x1xf32>
      %110 = vector.extract_strided_slice %22 {offsets = [0, 6], sizes = [4, 1], strides = [1, 1]} : vector<4x7xf32> to vector<4x1xf32>
      %cst_32 = arith.constant 9.99999993E-9 : f32
      %111 = vector.broadcast %cst_32 : f32 to vector<4x1xf32>
      %112 = arith.addf %110, %111 : vector<4x1xf32>
      %113 = math.log %112 : vector<4x1xf32>
      %114 = arith.mulf %20, %113 : vector<4x1xf32>
      %115 = arith.subf %19, %114 : vector<4x1xf32>
      %116 = vector.extract_strided_slice %21 {offsets = [0, 6], sizes = [4, 1], strides = [1, 1]} : vector<4x7xf32> to vector<4x1xf32>
      %117 = arith.subf %19, %116 : vector<4x1xf32>
      %118 = vector.extract_strided_slice %24 {offsets = [0, 6], sizes = [4, 1], strides = [1, 1]} : vector<4x7xf32> to vector<4x1xf32>
      %c6_i32 = arith.constant 6 : i32
      %119 = vector.broadcast %c6_i32 : i32 to vector<4x1xi32>
      %120 = arith.cmpi eq, %23, %119 : vector<4x1xi32>
      %121 = arith.select %120, %115, %117 : vector<4x1xi1>, vector<4x1xf32>
      %122 = arith.mulf %118, %121 : vector<4x1xf32>
      %123 = arith.addf %109, %122 : vector<4x1xf32>
      %cst_33 = arith.constant 9.99999996E-13 : f32
      %124 = vector.broadcast %cst_33 : f32 to vector<4x1xf32>
      %125 = arith.maximumf %20, %124 : vector<4x1xf32>
      %126 = tpu.reciprocal %125 {approx = true} : vector<4x1xf32> -> vector<4x1xf32>
      %cst_34 = arith.constant -1.000000e+00 : f32
      %127 = vector.broadcast %cst_34 : f32 to vector<4x1xf32>
      %128 = arith.mulf %127, %123 : vector<4x1xf32>
      %129 = arith.mulf %128, %126 : vector<4x1xf32>
      %c0_35 = arith.constant 0 : index
      %c0_36 = arith.constant 0 : index
      %130 = vector.load %arg9[%c0_35, %c0_36] : memref<4x1xf32, #tpu.memory_space<vmem>>, vector<4x1xf32>
      tpu.vector_store %arg9[%c0_35, %c0_36], %129 {strides = array<i32>} : memref<4x1xf32, #tpu.memory_space<vmem>>, vector<4x1xf32>,
    } else {
    }
    return
  }
  func.func @transform_0(%arg0: i32, %arg1: i32, %arg2: i32) -> (i32, i32) {
    %c0_i32 = arith.constant 0 : i32
    %c0_i32_0 = arith.constant 0 : i32
    return %arg0, %c0_i32 : i32, i32
  }
  func.func @transform_1(%arg0: i32, %arg1: i32, %arg2: i32) -> (i32, i32) {
    %c0_i32 = arith.constant 0 : i32
    %c0_i32_0 = arith.constant 0 : i32
    return %arg2, %c0_i32 : i32, i32
  }
  func.func @transform_2(%arg0: i32, %arg1: i32, %arg2: i32) -> (i32, i32) {
    %0 = arith.muli %arg2, %arg1 : i32
    %c0_i32 = arith.constant 0 : i32
    return %arg0, %0 : i32, i32
  }
  func.func @transform_3(%arg0: i32, %arg1: i32, %arg2: i32) -> (i32, i32) {
    %c1_i32 = arith.constant 1 : i32
    %0 = arith.subi %c1_i32, %arg1 : i32
    %1 = arith.muli %arg2, %0 : i32
    %c0_i32 = arith.constant 0 : i32
    %c0_i32_0 = arith.constant 0 : i32
    return %1, %c0_i32 : i32, i32
  }
  func.func @transform_4(%arg0: i32, %arg1: i32, %arg2: i32) -> (i32, i32) {
    %c0_i32 = arith.constant 0 : i32
    %c0_i32_0 = arith.constant 0 : i32
    return %arg0, %c0_i32 : i32, i32
  }
  func.func @transform_5(%arg0: i32, %arg1: i32, %arg2: i32) -> (i32, i32) {
    %c0_i32 = arith.constant 0 : i32
    %c0_i32_0 = arith.constant 0 : i32
    return %arg0, %c0_i32 : i32, i32
  }
  func.func @transform_6(%arg0: i32, %arg1: i32, %arg2: i32) -> (i32, i32) {
    %c0_i32 = arith.constant 0 : i32
    %c0_i32_0 = arith.constant 0 : i32
    return %arg0, %c0_i32 : i32, i32
  }
}

</mosaic_0001>

<llo_original>
// kernel: tpu_custom_call.1
$region0: #{tpu_custom_call.1}
  #allocation0 [shape = 'u32[]', space=smem, size = 0x4, offset = 0x4, fixed_abs, tag = 'smem constant byte address 0x4 - core index']
  #allocation1 [shape = 'u32[144,128]{1,0:T(1,128)}', space=vmem, size = 0x12000, scoped, tag = 'internal scratch']
  #allocation2 [shape = 'f32[4,1]{1,0:T(4,128)}', space=vmem, size = 0x800, scoped, tag = 'scratch operand']
  #allocation3 [shape = 'f32[4,7]{1,0:T(4,128)}', space=vmem, size = 0x800, scoped, tag = 'scratch operand']
  #allocation4 [shape = 'f32[4,1]{1,0:T(4,128)}', space=vmem, size = 0x800, scoped, tag = 'scratch operand']
  #allocation5 [shape = 'f32[4,7]{1,0:T(4,128)}', space=vmem, size = 0x800, scoped, tag = 'scratch operand']
  #allocation6 [shape = 'f32[4,1]{1,0:T(4,128)}', space=vmem, size = 0x800, scoped, tag = 'scratch operand']
  %s0 = inlined_call_operand.vmem [shape: f32[4,32], index: 0, kind: input, shape index: {}]
  %s1 = inlined_call_operand.vmem [shape: f32[16,32], index: 1, kind: input, shape index: {}]
  %s2 = inlined_call_operand.vmem [shape: f32[4,16], index: 2, kind: input, shape index: {}]
  %s3 = inlined_call_operand.vmem [shape: f32[16,7], index: 3, kind: input, shape index: {}]
  %s4 = inlined_call_operand.vmem [shape: f32[4,7], index: 4, kind: input, shape index: {}]
  %s5 = inlined_call_operand.vmem [shape: s32[4,1], index: 5, kind: input, shape index: {}]
  %s6 = inlined_call_operand.vmem [shape: f32[4,1], index: 6, kind: output, shape index: {}]
  %s7 = sld [smem:[#allocation0]]
  $region73: #{tpu_custom_call.1} parent=0
    _
  %s9 = ssub.s32 1, %s7
  %s10 = scalar_select 0, %s9, %s7
  loop: start=0, step=1, limit=4
  $region2: #{tpu_custom_call.1} parent=0 // loop_pre_header
    _
  $region3: #{tpu_custom_call.1} parent=0 // loop_header
    %s12 = sphi 0, %s16
    %p13 = scmp.ge.s32.totalorder %s12, 4
    %s19 = sphi 0, %s38
    %s20 = sphi 0, %s34
    %s21 = sphi 0, %s30
    %s22 = sphi 0, %s19
    %s23 = sphi 0, %s20
    %s24 = sphi 0, %s21
    %s25 = sphi 0, %s22
    %s26 = sphi 0, %s23
    %s27 = sphi 0, %s24
    %s41 = sphi 0, %s43
    %s44 = sphi 0, %s41
    %s45 = sphi 0, %s44
    %s61 = sphi 0, %s45
    %s67 = sphi 0, %s69
    %s70 = sphi 0, %s67
    %s71 = sphi 0, %s70
    %s87 = sphi 0, %s71
    %s97 = sphi 0, %s99
    %s100 = sphi 0, %s97
    %s101 = sphi 0, %s100
    %s117 = sphi 0, %s101
    %s127 = sphi 0, %s129
    %s130 = sphi 0, %s127
    %s131 = sphi 0, %s130
    %s147 = sphi 0, %s131
    %s153 = sphi 0, %s155
    %s156 = sphi 0, %s153
    %s157 = sphi 0, %s156
    %s173 = sphi 0, %s157
    %s179 = sphi 0, %s181
    %s182 = sphi 0, %s179
    %s183 = sphi 0, %s182
    %s199 = sphi 0, %s183
    %s205 = sphi 0, %s207
    %s208 = sphi 0, %s205
    %s209 = sphi 0, %s208
    %s225 = sphi 0, %s209
  $region4: #{tpu_custom_call.1} parent=0 // loop_header_branch
    %15 = sbr.rel (%p13) target = $region8
  $region5: #{tpu_custom_call.1} parent=0 // loop_body
    %s17 = ssub.s32 %s12, 1
    %s18 = ssub.s32 %s12, 2
    %s28 = sadd.s32 1, %s21
    %p29 = scmp.ge.s32.totalorder %s28, 1
    %s30 = scalar_select %p29, 0, %s28
    %s31 = sadd.s32 1, %s20
    %s32 = scalar_select %p29, %s31, %s20
    %p33 = scmp.ge.s32.totalorder %s32, 2
    %s34 = scalar_select %p33, 0, %s32
    %s35 = sadd.s32 1, %s19
    %s36 = scalar_select %p33, %s35, %s19
    %p37 = scmp.ge.s32.totalorder %s36, 1
    %s38 = scalar_select %p37, 0, %s36
    %s39 = ssub.s32 %s19, %s38
    %p40 = scmp.eq.s32.totalorder %s39, 0
    %s42 = sadd.s32 %s41, 1
    %s43 = scalar_select %p40, %s41, %s42
    %p46 = pneg %p40
    %p47 = scmp.eq.s32.totalorder %s12, 1
    %p48 = por %p46, %p47
    %p49 = scmp.ne.s32.totalorder %s41, %s44
    %p50 = scmp.eq.s32.totalorder %s12, 0
    %p51 = por %p49, %p50
    %p52 = scmp.ne.s32.totalorder %s41, %s44
    %p53 = scmp.eq.s32.totalorder %s17, 1
    %p54 = por %p52, %p53
    %p55 = scmp.ne.s32.totalorder %s44, %s45
    %p56 = scmp.eq.s32.totalorder %s17, 0
    %p57 = por %p55, %p56
    %p58 = scmp.ne.s32.totalorder %s44, %s45
    %p59 = scmp.eq.s32.totalorder %s18, 1
    %p60 = por %p58, %p59
    %p62 = scmp.ne.s32.totalorder %s45, %s61
    %p63 = scmp.eq.s32.totalorder %s18, 0
    %p64 = por %p62, %p63
    %s65 = ssub.s32 %s21, %s30
    %p66 = scmp.eq.s32.totalorder %s65, 0
    %s68 = sadd.s32 %s67, 1
    %s69 = scalar_select %p66, %s67, %s68
    %p72 = pneg %p66
    %p73 = scmp.eq.s32.totalorder %s12, 1
    %p74 = por %p72, %p73
    %p75 = scmp.ne.s32.totalorder %s67, %s70
    %p76 = scmp.eq.s32.totalorder %s12, 0
    %p77 = por %p75, %p76
    %p78 = scmp.ne.s32.totalorder %s67, %s70
    %p79 = scmp.eq.s32.totalorder %s17, 1
    %p80 = por %p78, %p79
    %p81 = scmp.ne.s32.totalorder %s70, %s71
    %p82 = scmp.eq.s32.totalorder %s17, 0
    %p83 = por %p81, %p82
    %p84 = scmp.ne.s32.totalorder %s70, %s71
    %p85 = scmp.eq.s32.totalorder %s18, 1
    %p86 = por %p84, %p85
    %p88 = scmp.ne.s32.totalorder %s71, %s87
    %p89 = scmp.eq.s32.totalorder %s18, 0
    %p90 = por %p88, %p89
    %s91 = smul.u32 %s21, %s20
    %s92 = smul.u32 %s30, %s34
    %s93 = ssub.s32 %s19, %s38
    %s94 = ssub.s32 %s91, %s92
    %s95 = sor.u32 %s93, %s94
    %p96 = scmp.eq.s32.totalorder %s95, 0
    %s98 = sadd.s32 %s97, 1
    %s99 = scalar_select %p96, %s97, %s98
    %p102 = pneg %p96
    %p103 = scmp.eq.s32.totalorder %s12, 1
    %p104 = por %p102, %p103
    %p105 = scmp.ne.s32.totalorder %s97, %s100
    %p106 = scmp.eq.s32.totalorder %s12, 0
    %p107 = por %p105, %p106
    %p108 = scmp.ne.s32.totalorder %s97, %s100
    %p109 = scmp.eq.s32.totalorder %s17, 1
    %p110 = por %p108, %p109
    %p111 = scmp.ne.s32.totalorder %s100, %s101
    %p112 = scmp.eq.s32.totalorder %s17, 0
    %p113 = por %p111, %p112
    %p114 = scmp.ne.s32.totalorder %s100, %s101
    %p115 = scmp.eq.s32.totalorder %s18, 1
    %p116 = por %p114, %p115
    %p118 = scmp.ne.s32.totalorder %s101, %s117
    %p119 = scmp.eq.s32.totalorder %s18, 0
    %p120 = por %p118, %p119
    %s121 = ssub.s32 1, %s20
    %s122 = smul.u32 %s21, %s121
    %s123 = ssub.s32 1, %s34
    %s124 = smul.u32 %s30, %s123
    %s125 = ssub.s32 %s122, %s124
    %p126 = scmp.eq.s32.totalorder %s125, 0
    %s128 = sadd.s32 %s127, 1
    %s129 = scalar_select %p126, %s127, %s128
    %p132 = pneg %p126
    %p133 = scmp.eq.s32.totalorder %s12, 1
    %p134 = por %p132, %p133
    %p135 = scmp.ne.s32.totalorder %s127, %s130
    %p136 = scmp.eq.s32.totalorder %s12, 0
    %p137 = por %p135, %p136
    %p138 = scmp.ne.s32.totalorder %s127, %s130
    %p139 = scmp.eq.s32.totalorder %s17, 1
    %p140 = por %p138, %p139
    %p141 = scmp.ne.s32.totalorder %s130, %s131
    %p142 = scmp.eq.s32.totalorder %s17, 0
    %p143 = por %p141, %p142
    %p144 = scmp.ne.s32.totalorder %s130, %s131
    %p145 = scmp.eq.s32.totalorder %s18, 1
    %p146 = por %p144, %p145
    %p148 = scmp.ne.s32.totalorder %s131, %s147
    %p149 = scmp.eq.s32.totalorder %s18, 0
    %p150 = por %p148, %p149
    %s151 = ssub.s32 %s19, %s38
    %p152 = scmp.eq.s32.totalorder %s151, 0
    %s154 = sadd.s32 %s153, 1
    %s155 = scalar_select %p152, %s153, %s154
    %p158 = pneg %p152
    %p159 = scmp.eq.s32.totalorder %s12, 1
    %p160 = por %p158, %p159
    %p161 = scmp.ne.s32.totalorder %s153, %s156
    %p162 = scmp.eq.s32.totalorder %s12, 0
    %p163 = por %p161, %p162
    %p164 = scmp.ne.s32.totalorder %s153, %s156
    %p165 = scmp.eq.s32.totalorder %s17, 1
    %p166 = por %p164, %p165
    %p167 = scmp.ne.s32.totalorder %s156, %s157
    %p168 = scmp.eq.s32.totalorder %s17, 0
    %p169 = por %p167, %p168
    %p170 = scmp.ne.s32.totalorder %s156, %s157
    %p171 = scmp.eq.s32.totalorder %s18, 1
    %p172 = por %p170, %p171
    %p174 = scmp.ne.s32.totalorder %s157, %s173
    %p175 = scmp.eq.s32.totalorder %s18, 0
    %p176 = por %p174, %p175
    %s177 = ssub.s32 %s19, %s38
    %p178 = scmp.eq.s32.totalorder %s177, 0
    %s180 = sadd.s32 %s179, 1
    %s181 = scalar_select %p178, %s179, %s180
    %p184 = pneg %p178
    %p185 = scmp.eq.s32.totalorder %s12, 1
    %p186 = por %p184, %p185
    %p187 = scmp.ne.s32.totalorder %s179, %s182
    %p188 = scmp.eq.s32.totalorder %s12, 0
    %p189 = por %p187, %p188
    %p190 = scmp.ne.s32.totalorder %s179, %s182
    %p191 = scmp.eq.s32.totalorder %s17, 1
    %p192 = por %p190, %p191
    %p193 = scmp.ne.s32.totalorder %s182, %s183
    %p194 = scmp.eq.s32.totalorder %s17, 0
    %p195 = por %p193, %p194
    %p196 = scmp.ne.s32.totalorder %s182, %s183
    %p197 = scmp.eq.s32.totalorder %s18, 1
    %p198 = por %p196, %p197
    %p200 = scmp.ne.s32.totalorder %s183, %s199
    %p201 = scmp.eq.s32.totalorder %s18, 0
    %p202 = por %p200, %p201
    %s203 = ssub.s32 %s19, %s38
    %p204 = scmp.eq.s32.totalorder %s203, 0
    %s206 = sadd.s32 %s205, 1
    %s207 = scalar_select %p204, %s205, %s206
    %p210 = pneg %p204
    %p211 = scmp.eq.s32.totalorder %s12, 1
    %p212 = por %p210, %p211
    %p213 = scmp.ne.s32.totalorder %s205, %s208
    %p214 = scmp.eq.s32.totalorder %s12, 0
    %p215 = por %p213, %p214
    %p216 = scmp.ne.s32.totalorder %s205, %s208
    %p217 = scmp.eq.s32.totalorder %s17, 1
    %p218 = por %p216, %p217
    %p219 = scmp.ne.s32.totalorder %s208, %s209
    %p220 = scmp.eq.s32.totalorder %s17, 0
    %p221 = por %p219, %p220
    %p222 = scmp.ne.s32.totalorder %s208, %s209
    %p223 = scmp.eq.s32.totalorder %s18, 1
    %p224 = por %p222, %p223
    %p226 = scmp.ne.s32.totalorder %s209, %s225
    %p227 = scmp.eq.s32.totalorder %s18, 0
    %p228 = por %p226, %p227
    %p229 = scmp.le.s32.totalorder 1, %s12
    %p230 = scmp.lt.s32.totalorder %s12, 3
    %p231 = pnand %p229, %p230
    %p232 = pneg %p231
    // Predicated region
    $region9: #{tpu_custom_call.1} parent=5 // pred_check
      _
    $region10: #{tpu_custom_call.1} parent=5 // pred_check_branch
      %234 = sbr.rel (%p231) target = $region12
    $region11: #{tpu_custom_call.1} parent=5 // pred_region
      %s235 = ssub.s32 %s12, 1
      // Predicated region
      $region13: #{tpu_custom_call.1} parent=11 // pred_check
        %p236 = pneg %p57
      $region14: #{tpu_custom_call.1} parent=11 // pred_check_branch
        %238 = sbr.rel (%p236) target = $region16
      $region15: #{tpu_custom_call.1} parent=11 // pred_region
        %p239 = scmp.lt.s32.totalorder %s22, 0
        %s240 = scalar_select %p239, %s22, 0
        %s241 = smul.addr %s240, 4
        %s242 = scalar_lea.vmem %s0, %s241
      $region16: #{tpu_custom_call.1} parent=11 // pred_fallthru
        _
      // Predicated region
      $region17: #{tpu_custom_call.1} parent=11 // pred_check
        %p243 = pneg %p83
      $region18: #{tpu_custom_call.1} parent=11 // pred_check_branch
        %245 = sbr.rel (%p243) target = $region20
      $region19: #{tpu_custom_call.1} parent=11 // pred_region
        %s246 = smul.u32 2, %s24
        %p247 = scmp.lt.s32.totalorder %s246, 1
        %s248 = scalar_select %p247, %s246, 1
        %s249 = smul.addr %s248, 8
        %s250 = scalar_lea.vmem %s1, %s249
        %s251 = smul.u32 2, %s24
      $region20: #{tpu_custom_call.1} parent=11 // pred_fallthru
        _
      // Predicated region
      $region21: #{tpu_custom_call.1} parent=11 // pred_check
        %p252 = pneg %p169
      $region22: #{tpu_custom_call.1} parent=11 // pred_check_branch
        %254 = sbr.rel (%p252) target = $region24
      $region23: #{tpu_custom_call.1} parent=11 // pred_region
        %p255 = scmp.lt.s32.totalorder %s22, 0
        %s256 = scalar_select %p255, %s22, 0
        %s257 = smul.addr %s256, 4
        %s258 = scalar_lea.vmem %s4, %s257
      $region24: #{tpu_custom_call.1} parent=11 // pred_fallthru
        _
      // Predicated region
      $region25: #{tpu_custom_call.1} parent=11 // pred_check
        %p259 = pneg %p195
      $region26: #{tpu_custom_call.1} parent=11 // pred_check_branch
        %261 = sbr.rel (%p259) target = $region28
      $region27: #{tpu_custom_call.1} parent=11 // pred_region
        %p262 = scmp.lt.s32.totalorder %s22, 0
        %s263 = scalar_select %p262, %s22, 0
        %s264 = smul.addr %s263, 4
        %s265 = scalar_lea.vmem %s5, %s264
      $region28: #{tpu_custom_call.1} parent=11 // pred_fallthru
        _
    $region12: #{tpu_custom_call.1} parent=5 // pred_fallthru
      _
    %p266 = scmp.lt.s32.totalorder %s12, 2
    // Predicated region
    $region29: #{tpu_custom_call.1} parent=5 // pred_check
      %p267 = pneg %p266
    $region30: #{tpu_custom_call.1} parent=5 // pred_check_branch
      %269 = sbr.rel (%p267) target = $region32
    $region31: #{tpu_custom_call.1} parent=5 // pred_region
      // Predicated region
      $region33: #{tpu_custom_call.1} parent=31 // pred_check
        %p270 = pneg %p107
      $region34: #{tpu_custom_call.1} parent=31 // pred_check_branch
        %272 = sbr.rel (%p270) target = $region36
      $region35: #{tpu_custom_call.1} parent=31 // pred_region
        %s273 = smul.u32 %s21, %s20
        %p274 = scmp.lt.s32.totalorder %s19, 0
        %s275 = scalar_select %p274, %s19, 0
        %p276 = scmp.lt.s32.totalorder %s273, 0
        %s277 = scalar_select %p276, %s273, 0
        %s278 = sadd.s32 %s277, %s275
        %s279 = smul.addr %s278, 4
        %s280 = scalar_lea.vmem %s2, %s279
        %s281 = smul.u32 %s21, %s20
      $region36: #{tpu_custom_call.1} parent=31 // pred_fallthru
        _
      // Predicated region
      $region37: #{tpu_custom_call.1} parent=31 // pred_check
        %p282 = pneg %p137
      $region38: #{tpu_custom_call.1} parent=31 // pred_check_branch
        %284 = sbr.rel (%p282) target = $region40
      $region39: #{tpu_custom_call.1} parent=31 // pred_region
        %s285 = ssub.s32 1, %s20
        %s286 = smul.u32 %s21, %s285
        %s287 = smul.u32 2, %s286
        %p288 = scmp.lt.s32.totalorder %s287, 1
        %s289 = scalar_select %p288, %s287, 1
        %s290 = smul.addr %s289, 8
        %s291 = scalar_lea.vmem %s3, %s290
        %s292 = ssub.s32 1, %s20
        %s293 = smul.u32 %s21, %s292
        %s294 = smul.u32 2, %s293
      $region40: #{tpu_custom_call.1} parent=31 // pred_fallthru
        _
    $region32: #{tpu_custom_call.1} parent=5 // pred_fallthru
      _
    %p295 = scmp.le.s32.totalorder 1, %s12
    %p296 = scmp.lt.s32.totalorder %s12, 3
    %p297 = pnand %p295, %p296
    %p298 = pneg %p297
    // Predicated region
    $region41: #{tpu_custom_call.1} parent=5 // pred_check
      _
    $region42: #{tpu_custom_call.1} parent=5 // pred_check_branch
      %300 = sbr.rel (%p297) target = $region44
    $region43: #{tpu_custom_call.1} parent=5 // pred_region
      %s301 = ssub.s32 %s12, 1
      %p302 = scmp.lt.s32.totalorder %s22, 0
      %s303 = scalar_select %p302, %s22, 0
      %s304 = smul.addr %s303, 4
      %s305 = scalar_lea.vmem %s0, %s304
      %p306 = pneg %p57
      %p307 = pneg %p54
      %s308 = smul.u32 2, %s24
      %p309 = scmp.lt.s32.totalorder %s308, 1
      %s310 = scalar_select %p309, %s308, 1
      %s311 = smul.addr %s310, 8
      %s312 = scalar_lea.vmem %s1, %s311
      %p313 = pneg %p83
      %p314 = pneg %p80
      %s315 = smul.u32 %s24, %s23
      %p316 = scmp.lt.s32.totalorder %s22, 0
      %s317 = scalar_select %p316, %s22, 0
      %p318 = scmp.lt.s32.totalorder %s315, 0
      %s319 = scalar_select %p318, %s315, 0
      %s320 = sadd.s32 %s319, %s317
      %s321 = smul.addr %s320, 4
      %s322 = scalar_lea.vmem %s2, %s321
      %p323 = pneg %p113
      %p324 = pneg %p110
      %s325 = ssub.s32 1, %s23
      %s326 = smul.u32 %s24, %s325
      %s327 = smul.u32 2, %s326
      %p328 = scmp.lt.s32.totalorder %s327, 1
      %s329 = scalar_select %p328, %s327, 1
      %s330 = smul.addr %s329, 8
      %s331 = scalar_lea.vmem %s3, %s330
      %p332 = pneg %p143
      %p333 = pneg %p140
      %p334 = scmp.lt.s32.totalorder %s22, 0
      %s335 = scalar_select %p334, %s22, 0
      %s336 = smul.addr %s335, 4
      %s337 = scalar_lea.vmem %s4, %s336
      %p338 = pneg %p169
      %p339 = pneg %p166
      %p340 = scmp.lt.s32.totalorder %s22, 0
      %s341 = scalar_select %p340, %s22, 0
      %s342 = smul.addr %s341, 4
      %s343 = scalar_lea.vmem %s5, %s342
      %p344 = pneg %p195
      %p345 = pneg %p192
      %p346 = pneg %p221
      %p347 = pneg %p218
      %p348 = scmp.lt.s32.totalorder %s22, 0
      %s349 = scalar_select %p348, %s22, 0
      %s350 = smul.addr %s349, 4
      %s351 = scalar_lea.vmem %s6, %s350
      %p352 = scmp.lt.s32.totalorder %s22, 0
      %s353 = scalar_select %p352, %s22, 0
      %s354 = smul.addr %s353, 4
      %s355 = scalar_lea.vmem %s0, %s354
      %s356 = smul.u32 2, %s24
      %p357 = scmp.lt.s32.totalorder %s356, 1
      %s358 = scalar_select %p357, %s356, 1
      %s359 = smul.addr %s358, 8
      %s360 = scalar_lea.vmem %s1, %s359
      %s361 = smul.u32 2, %s24
      %s362 = smul.u32 %s24, %s23
      %p363 = scmp.lt.s32.totalorder %s22, 0
      %s364 = scalar_select %p363, %s22, 0
      %p365 = scmp.lt.s32.totalorder %s362, 0
      %s366 = scalar_select %p365, %s362, 0
      %s367 = sadd.s32 %s366, %s364
      %s368 = smul.addr %s367, 4
      %s369 = scalar_lea.vmem %s2, %s368
      %s370 = smul.u32 %s24, %s23
      %s371 = ssub.s32 1, %s23
      %s372 = smul.u32 %s24, %s371
      %s373 = smul.u32 2, %s372
      %p374 = scmp.lt.s32.totalorder %s373, 1
      %s375 = scalar_select %p374, %s373, 1
      %s376 = smul.addr %s375, 8
      %s377 = scalar_lea.vmem %s3, %s376
      %s378 = ssub.s32 1, %s23
      %s379 = smul.u32 %s24, %s378
      %s380 = smul.u32 2, %s379
      %p381 = scmp.lt.s32.totalorder %s22, 0
      %s382 = scalar_select %p381, %s22, 0
      %s383 = smul.addr %s382, 4
      %s384 = scalar_lea.vmem %s4, %s383
      %p385 = scmp.lt.s32.totalorder %s22, 0
      %s386 = scalar_select %p385, %s22, 0
      %s387 = smul.addr %s386, 4
      %s388 = scalar_lea.vmem %s5, %s387
      %p389 = scmp.lt.s32.totalorder %s22, 0
      %s390 = scalar_select %p389, %s22, 0
      %s391 = smul.addr %s390, 4
      %s392 = scalar_lea.vmem %s6, %s391
      %p393 = scmp.eq.s32.totalorder %s23, 0
      %p394 = scmp.eq.s32.totalorder %s24, 0
      %p395 = pnand %p393, %p394
      %p396 = pneg %p395
      // Predicated region
      $region45: #{tpu_custom_call.1} parent=43 // pred_check
        _
      $region46: #{tpu_custom_call.1} parent=43 // pred_check_branch
        %398 = sbr.rel (%p395) target = $region48
      $region47: #{tpu_custom_call.1} parent=43 // pred_region
        %vm399 = vcmask 3072
        %400 = vst.msk [vmem:[#allocation2] sm:$0xf] %vm399, -1e+30
        %vm401 = vcmask 52224
        %402 = vst.msk [vmem:[#allocation3] sm:$0xf] %vm401, 0.0
        %403 = vst.msk [vmem:[#allocation4] sm:$0xf] %vm399, 0.0
        %404 = vst.msk [vmem:[#allocation5] sm:$0xf] %vm401, 0.0
        %405 = vst.msk [vmem:[#allocation6] sm:$0xf] %vm399, 0.0
        %406 = vst.msk [vmem:[%s392] sm:$0xf] %vm399, 0.0
      $region48: #{tpu_custom_call.1} parent=43 // pred_fallthru
        _
      %v407 = vld [vmem:[%s355] sm:$0xf]
      %v408 = vld [vmem:[%s360] sm:$0xff]
      %v409 = vld [vmem:[%s360 + $0x8] sm:$0xff]
      %vm410 = vcmask 261120
      %v412 = vsel %vm410, %v407, 0
      %v415 = vsel %vm410, %v408, 0
      %v418 = vsel %vm410, %v409, 0
      %420 = vmatprep.subr.mxu0 0.0
      %421 = vmatpush1.xpose.msra.mxu0 0.0
      %422 = vmatprep.subr.mxu0 0.0
      %423 = vmatpush1.xpose.msra.mxu0 0.0
      %424 = vmatprep.subr.mxu0 0.0
      %425 = vmatpush1.xpose.msra.mxu0 0.0
      %426 = vmatprep.subr.mxu0 0.0
      %427 = vmatpush1.xpose.msra.mxu0 0.0
      %428 = vmatprep.subr.mxu0 0.0
      %429 = vmatpush1.xpose.msra.mxu0 0.0
      %430 = vmatprep.subr.mxu0 0.0
      %431 = vmatpush1.xpose.msra.mxu0 0.0
      %432 = vmatprep.subr.mxu0 0.0
      %433 = vmatpush1.xpose.msra.mxu0 0.0
      %434 = vmatprep.subr.mxu0 0.0
      %435 = vmatpush1.xpose.msra.mxu0 0.0
      %436 = vmatprep.subr.mxu0 0.0
      %437 = vmatpush1.xpose.msra.mxu0 0.0
      %438 = vmatprep.subr.mxu0 0.0
      %439 = vmatpush1.xpose.msra.mxu0 0.0
      %440 = vmatprep.subr.mxu0 0.0
      %441 = vmatpush1.xpose.msra.mxu0 0.0
      %442 = vmatprep.subr.mxu0 0.0
      %443 = vmatpush1.xpose.msra.mxu0 0.0
      %444 = vmatprep.subr.mxu0 0.0
      %445 = vmatpush1.xpose.msra.mxu0 0.0
      %446 = vmatprep.subr.mxu0 0.0
      %447 = vmatpush1.xpose.msra.mxu0 0.0
      %448 = vmatprep.subr.mxu0 0.0
      %449 = vmatpush1.xpose.msra.mxu0 %v418
      %450 = vmatprep.subr.mxu0 0.0
      %451 = vmatpush1.xpose.msra.mxu0 %v415
      %452 = vmatprep.subr.mxu0 0.0
      %453 = vmatpush2.xpose.msra.mxu0 0.0
      %454 = vmatprep.subr.mxu0 0.0
      %455 = vmatpush2.xpose.msra.mxu0 0.0
      %456 = vmatprep.subr.mxu0 0.0
      %457 = vmatpush2.xpose.msra.mxu0 0.0
      %458 = vmatprep.subr.mxu0 0.0
      %459 = vmatpush2.xpose.msra.mxu0 0.0
      %460 = vmatprep.subr.mxu0 0.0
      %461 = vmatpush2.xpose.msra.mxu0 0.0
      %462 = vmatprep.subr.mxu0 0.0
      %463 = vmatpush2.xpose.msra.mxu0 0.0
      %464 = vmatprep.subr.mxu0 0.0
      %465 = vmatpush2.xpose.msra.mxu0 0.0
      %466 = vmatprep.subr.mxu0 0.0
      %467 = vmatpush2.xpose.msra.mxu0 0.0
      %468 = vmatprep.subr.mxu0 0.0
      %469 = vmatpush2.xpose.msra.mxu0 0.0
      %470 = vmatprep.subr.mxu0 0.0
      %471 = vmatpush2.xpose.msra.mxu0 0.0
      %472 = vmatprep.subr.mxu0 0.0
      %473 = vmatpush2.xpose.msra.mxu0 0.0
      %474 = vmatprep.subr.mxu0 0.0
      %475 = vmatpush2.xpose.msra.mxu0 0.0
      %476 = vmatprep.subr.mxu0 0.0
      %477 = vmatpush2.xpose.msra.mxu0 0.0
      %478 = vmatprep.subr.mxu0 0.0
      %479 = vmatpush2.xpose.msra.mxu0 0.0
      %480 = vmatprep.subr.mxu0 0.0
      %481 = vmatpush2.xpose.msra.mxu0 0.0
      %482 = vmatprep.subr.mxu0 0.0
      %483 = vmatpush2.xpose.msra.mxu0 0.0
      %484 = vmatprep.mubr.f32.mxu0 0.0
      %485 = vmatmul.mubr.f32.gmra.mxu0 %v412
      %v486 = vpop.f32.mrf.mxu0
      %v487 = vadd.f32 0.0, %v486
      %v488 = vpop.f32.mrf.mxu0
      %489 = vdwg.mxu0
      // Predicated region
      $region49: #{tpu_custom_call.1} parent=43 // pred_check
        %p490 = pneg %p393
      $region50: #{tpu_custom_call.1} parent=43 // pred_check_branch
        %492 = sbr.rel (%p490) target = $region52
      $region51: #{tpu_custom_call.1} parent=43 // pred_region
        %v493 = vld [vmem:[#allocation2] sm:$0xf]
        %vm494 = vcmask 125952
        %v495 = vsel %vm494, %v487, -inf
        %496 = vmax.xlane.f32.xlu0 %v495
        %v497 = vpop.xlane.xlu0 %496
        %v498 = vmax.f32 %v493, %v497
        %v499 = vsub.f32 %v493, %v498
        %v500 = vmul.f32 %v499, 1.442695
        %v501 = vpow.pop %v500
        %503 = vset.pattern.permute.xlu0 0
        %504 = vperm.xlu0 %503, %v498
        %v505 = vpop.permute.xlu0 %504
        %v507 = vsub.f32 %v487, %v505
        %v508 = vmul.f32 %v507, 1.442695
        %v509 = vpow.pop %v508
        %v510 = vld [vmem:[%s377] sm:$0xff]
        %v511 = vld [vmem:[%s377 + $0x8] sm:$0xff]
        %vm512 = vcmask 130048
        %v514 = vsel %vm512, %v509, 0
        %516 = vmatprep.subr.mxu0 0.0
        %517 = vmatpush1.msra.mxu0 0.0
        %518 = vmatprep.subr.mxu0 0.0
        %519 = vmatpush1.msra.mxu0 0.0
        %520 = vmatprep.subr.mxu0 0.0
        %521 = vmatpush1.msra.mxu0 0.0
        %522 = vmatprep.subr.mxu0 0.0
        %523 = vmatpush1.msra.mxu0 0.0
        %524 = vmatprep.subr.mxu0 0.0
        %525 = vmatpush1.msra.mxu0 0.0
        %526 = vmatprep.subr.mxu0 0.0
        %527 = vmatpush1.msra.mxu0 0.0
        %528 = vmatprep.subr.mxu0 0.0
        %529 = vmatpush1.msra.mxu0 0.0
        %530 = vmatprep.subr.mxu0 0.0
        %531 = vmatpush1.msra.mxu0 0.0
        %532 = vmatprep.subr.mxu0 0.0
        %533 = vmatpush1.msra.mxu0 0.0
        %534 = vmatprep.subr.mxu0 0.0
        %535 = vmatpush1.msra.mxu0 0.0
        %536 = vmatprep.subr.mxu0 0.0
        %537 = vmatpush1.msra.mxu0 0.0
        %538 = vmatprep.subr.mxu0 0.0
        %539 = vmatpush1.msra.mxu0 0.0
        %540 = vmatprep.subr.mxu0 0.0
        %541 = vmatpush1.msra.mxu0 0.0
        %542 = vmatprep.subr.mxu0 0.0
        %543 = vmatpush1.msra.mxu0 0.0
        %544 = vmatprep.subr.mxu0 0.0
        %545 = vmatpush1.msra.mxu0 %v511
        %546 = vmatprep.subr.mxu0 0.0
        %547 = vmatpush1.msra.mxu0 %v510
        %548 = vmatprep.subr.mxu0 0.0
        %549 = vmatpush2.msra.mxu0 0.0
        %550 = vmatprep.subr.mxu0 0.0
        %551 = vmatpush2.msra.mxu0 0.0
        %552 = vmatprep.subr.mxu0 0.0
        %553 = vmatpush2.msra.mxu0 0.0
        %554 = vmatprep.subr.mxu0 0.0
        %555 = vmatpush2.msra.mxu0 0.0
        %556 = vmatprep.subr.mxu0 0.0
        %557 = vmatpush2.msra.mxu0 0.0
        %558 = vmatprep.subr.mxu0 0.0
        %559 = vmatpush2.msra.mxu0 0.0
        %560 = vmatprep.subr.mxu0 0.0
        %561 = vmatpush2.msra.mxu0 0.0
        %562 = vmatprep.subr.mxu0 0.0
        %563 = vmatpush2.msra.mxu0 0.0
        %564 = vmatprep.subr.mxu0 0.0
        %565 = vmatpush2.msra.mxu0 0.0
        %566 = vmatprep.subr.mxu0 0.0
        %567 = vmatpush2.msra.mxu0 0.0
        %568 = vmatprep.subr.mxu0 0.0
        %569 = vmatpush2.msra.mxu0 0.0
        %570 = vmatprep.subr.mxu0 0.0
        %571 = vmatpush2.msra.mxu0 0.0
        %572 = vmatprep.subr.mxu0 0.0
        %573 = vmatpush2.msra.mxu0 0.0
        %574 = vmatprep.subr.mxu0 0.0
        %575 = vmatpush2.msra.mxu0 0.0
        %576 = vmatprep.subr.mxu0 0.0
        %577 = vmatpush2.msra.mxu0 0.0
        %578 = vmatprep.subr.mxu0 0.0
        %579 = vmatpush2.msra.mxu0 0.0
        %580 = vmatprep.mubr.f32.mxu0 0.0
        %581 = vmatmul.mubr.f32.gmra.mxu0 %v514
        %v582 = vpop.f32.mrf.mxu0
        %v583 = vadd.f32 0.0, %v582
        %v584 = vpop.f32.mrf.mxu0
        %585 = vdwg.mxu0
        %v586 = vld [vmem:[#allocation3] sm:$0xf]
        %588 = vset.pattern.permute.xlu0 0
        %589 = vperm.xlu0 %588, %v501
        %v590 = vpop.permute.xlu0 %589
        %v592 = vmul.f32 %v586, %v590
        %v593 = vadd.f32 %v592, %v583
        %vm594 = vcmask 52224
        %595 = vst.msk [vmem:[#allocation3] sm:$0xf] %vm594, %v593
        %vm596 = vcmask 3072
        %597 = vst.msk [vmem:[#allocation2] sm:$0xf] %vm596, %v498
      $region52: #{tpu_custom_call.1} parent=43 // pred_fallthru
        _
      %p598 = scmp.eq.s32.totalorder %s23, 1
      // Predicated region
      $region53: #{tpu_custom_call.1} parent=43 // pred_check
        %p599 = pneg %p598
      $region54: #{tpu_custom_call.1} parent=43 // pred_check_branch
        %601 = sbr.rel (%p599) target = $region56
      $region55: #{tpu_custom_call.1} parent=43 // pred_region
        %v602 = vld [vmem:[#allocation2] sm:$0xf]
        %604 = vset.pattern.permute.xlu0 0
        %605 = vperm.xlu0 %604, %v602
        %v606 = vpop.permute.xlu0 %605
        %v608 = vsub.f32 %v487, %v606
        %v609 = vmul.f32 %v608, 1.442695
        %v610 = vpow.pop %v609
        %v611 = vld [vmem:[%s369] sm:$0xf]
        %v612 = vld [vmem:[#allocation4] sm:$0xf]
        %v613 = vmul.f32 %v611, %v608
        %vm614 = vcmask 125952
        %v615 = vsel %vm614, %v613, 0.0
        %616 = vadd.xlane.f32.xlu0 %v615
        %v617 = vpop.xlane.xlu0 %616
        %v618 = vadd.f32 %v612, %v617
        %vm619 = vcmask 3072
        %620 = vst.msk [vmem:[#allocation4] sm:$0xf] %vm619, %v618
        %v621 = vld [vmem:[#allocation6] sm:$0xf]
        %v622 = vsel %vm614, %v611, 0.0
        %623 = vadd.xlane.f32.xlu0 %v622
        %v624 = vpop.xlane.xlu0 %623
        %v625 = vadd.f32 %v621, %v624
        %626 = vst.msk [vmem:[#allocation6] sm:$0xf] %vm619, %v625
        %v627 = vadd.f32 %v610, 1e-12
        %v628 = vld [vmem:[#allocation3] sm:$0xf]
        %v629 = vld [vmem:[#allocation5] sm:$0xf]
        %631 = vset.pattern.permute.xlu0 0
        %632 = vperm.xlu0 %631, %v628
        %v633 = vpop.permute.xlu0 %632
        %v635 = vadd.f32 %v633, %v627
        %v636 = vlog2.pop %v635
        %v637 = vmul.f32 %v636, 0.6931472
        %v638 = vmul.f32 %v611, %v637
        %v639 = vsel %vm614, %v638, 0.0
        %640 = vadd.xlane.f32.xlu0 %v639
        %v641 = vpop.xlane.xlu0 %640
        %v642 = vadd.f32 %v629, %v641
        %643 = vst.msk [vmem:[#allocation5] sm:$0xf] %vm619, %v642
        %v644 = vld [vmem:[#allocation5] sm:$0xf]
        %645 = vset.pattern.permute.xlu0 1
        %646 = vperm.xlu0 %645, %v628
        %v647 = vpop.permute.xlu0 %646
        %v649 = vadd.f32 %v647, %v627
        %v650 = vlog2.pop %v649
        %v651 = vmul.f32 %v650, 0.6931472
        %v652 = vmul.f32 %v611, %v651
        %v653 = vsel %vm614, %v652, 0.0
        %654 = vadd.xlane.f32.xlu0 %v653
        %v655 = vpop.xlane.xlu0 %654
        %v656 = vadd.f32 %v644, %v655
        %vm657 = vcmask 11272
        %658 = vst.msk [vmem:[#allocation5] sm:$0xf] %vm657, %v656
        %v659 = vld [vmem:[#allocation5] sm:$0xf]
        %660 = vset.pattern.permute.xlu0 2
        %661 = vperm.xlu0 %660, %v628
        %v662 = vpop.permute.xlu0 %661
        %v664 = vadd.f32 %v662, %v627
        %v665 = vlog2.pop %v664
        %v666 = vmul.f32 %v665, 0.6931472
        %v667 = vmul.f32 %v611, %v666
        %v668 = vsel %vm614, %v667, 0.0
        %669 = vadd.xlane.f32.xlu0 %v668
        %v670 = vpop.xlane.xlu0 %669
        %v671 = vadd.f32 %v659, %v670
        %vm672 = vcmask 19472
        %673 = vst.msk [vmem:[#allocation5] sm:$0xf] %vm672, %v671
        %v674 = vld [vmem:[#allocation5] sm:$0xf]
        %675 = vset.pattern.permute.xlu0 3
        %676 = vperm.xlu0 %675, %v628
        %v677 = vpop.permute.xlu0 %676
        %v679 = vadd.f32 %v677, %v627
        %v680 = vlog2.pop %v679
        %v681 = vmul.f32 %v680, 0.6931472
        %v682 = vmul.f32 %v611, %v681
        %v683 = vsel %vm614, %v682, 0.0
        %684 = vadd.xlane.f32.xlu0 %v683
        %v685 = vpop.xlane.xlu0 %684
        %v686 = vadd.f32 %v674, %v685
        %vm687 = vcmask 27672
        %688 = vst.msk [vmem:[#allocation5] sm:$0xf] %vm687, %v686
        %v689 = vld [vmem:[#allocation5] sm:$0xf]
        %690 = vset.pattern.permute.xlu0 4
        %691 = vperm.xlu0 %690, %v628
        %v692 = vpop.permute.xlu0 %691
        %v694 = vadd.f32 %v692, %v627
        %v695 = vlog2.pop %v694
        %v696 = vmul.f32 %v695, 0.6931472
        %v697 = vmul.f32 %v611, %v696
        %v698 = vsel %vm614, %v697, 0.0
        %699 = vadd.xlane.f32.xlu0 %v698
        %v700 = vpop.xlane.xlu0 %699
        %v701 = vadd.f32 %v689, %v700
        %vm702 = vcmask 35872
        %703 = vst.msk [vmem:[#allocation5] sm:$0xf] %vm702, %v701
        %v704 = vld [vmem:[#allocation5] sm:$0xf]
        %705 = vset.pattern.permute.xlu0 5
        %706 = vperm.xlu0 %705, %v628
        %v707 = vpop.permute.xlu0 %706
        %v709 = vadd.f32 %v707, %v627
        %v710 = vlog2.pop %v709
        %v711 = vmul.f32 %v710, 0.6931472
        %v712 = vmul.f32 %v611, %v711
        %v713 = vsel %vm614, %v712, 0.0
        %714 = vadd.xlane.f32.xlu0 %v713
        %v715 = vpop.xlane.xlu0 %714
        %v716 = vadd.f32 %v704, %v715
        %vm717 = vcmask 44072
        %718 = vst.msk [vmem:[#allocation5] sm:$0xf] %vm717, %v716
        %v719 = vld [vmem:[#allocation5] sm:$0xf]
        %720 = vset.pattern.permute.xlu0 6
        %721 = vperm.xlu0 %720, %v628
        %v722 = vpop.permute.xlu0 %721
        %v724 = vadd.f32 %v722, %v627
        %v725 = vlog2.pop %v724
        %v726 = vmul.f32 %v725, 0.6931472
        %v727 = vmul.f32 %v611, %v726
        %v728 = vsel %vm614, %v727, 0.0
        %729 = vadd.xlane.f32.xlu0 %v728
        %v730 = vpop.xlane.xlu0 %729
        %v731 = vadd.f32 %v719, %v730
        %vm732 = vcmask 52272
        %733 = vst.msk [vmem:[#allocation5] sm:$0xf] %vm732, %v731
      $region56: #{tpu_custom_call.1} parent=43 // pred_fallthru
        _
      %p734 = pnand %p598, %p394
      %p735 = pneg %p734
      // Predicated region
      $region57: #{tpu_custom_call.1} parent=43 // pred_check
        _
      $region58: #{tpu_custom_call.1} parent=43 // pred_check_branch
        %737 = sbr.rel (%p734) target = $region60
      $region59: #{tpu_custom_call.1} parent=43 // pred_region
        %v738 = vld [vmem:[#allocation4] sm:$0xf]
        %v739 = vld [vmem:[#allocation6] sm:$0xf]
        %v740 = vld [vmem:[#allocation5] sm:$0xf]
        %v741 = vld [vmem:[#allocation3] sm:$0xf]
        %v742 = vld [vmem:[%s388] sm:$0xf]
        %v743 = vld [vmem:[%s384] sm:$0xf]
        %v744 = vadd.f32 %v741, 1e-08
        %v745 = vlog2.pop %v744
        %v746 = vmul.f32 %v745, 0.6931472
        %v747 = vmul.f32 %v739, %v746
        %v748 = vsub.f32 %v738, %v747
        %v749 = vsub.f32 %v738, %v740
        %vm750 = vcmp.eq.s32.totalorder %v742, 0
        %v751 = vsel %vm750, %v748, %v749
        %v752 = vmul.f32 %v743, %v751
        %v753 = vadd.f32 %v752, 0.0
        %755 = vrot.lane.b32.xlu0 %v746, 127
        %v756 = vpop.permute.xlu0 %755
        %v758 = vmul.f32 %v739, %v756
        %v759 = vsub.f32 %v738, %v758
        %761 = vrot.lane.b32.xlu0 %v740, 127
        %v762 = vpop.permute.xlu0 %761
        %v764 = vsub.f32 %v738, %v762
        %vm765 = vcmp.eq.s32.totalorder %v742, 1
        %v766 = vsel %vm765, %v759, %v764
        %768 = vrot.lane.b32.xlu0 %v766, 1
        %v769 = vpop.permute.xlu0 %768
        %v771 = vmul.f32 %v743, %v769
        %773 = vrot.lane.b32.xlu0 %v771, 127
        %v774 = vpop.permute.xlu0 %773
        %v776 = vadd.f32 %v753, %v774
        %777 = vrot.lane.b32.xlu0 %v746, 126
        %v778 = vpop.permute.xlu0 %777
        %v780 = vmul.f32 %v739, %v778
        %v781 = vsub.f32 %v738, %v780
        %782 = vrot.lane.b32.xlu0 %v740, 126
        %v783 = vpop.permute.xlu0 %782
        %v785 = vsub.f32 %v738, %v783
        %vm786 = vcmp.eq.s32.totalorder %v742, 2
        %v787 = vsel %vm786, %v781, %v785
        %789 = vrot.lane.b32.xlu0 %v787, 2
        %v790 = vpop.permute.xlu0 %789
        %v792 = vmul.f32 %v743, %v790
        %794 = vrot.lane.b32.xlu0 %v792, 126
        %v795 = vpop.permute.xlu0 %794
        %v797 = vadd.f32 %v776, %v795
        %798 = vrot.lane.b32.xlu0 %v746, 125
        %v799 = vpop.permute.xlu0 %798
        %v801 = vmul.f32 %v739, %v799
        %v802 = vsub.f32 %v738, %v801
        %803 = vrot.lane.b32.xlu0 %v740, 125
        %v804 = vpop.permute.xlu0 %803
        %v806 = vsub.f32 %v738, %v804
        %vm807 = vcmp.eq.s32.totalorder %v742, 3
        %v808 = vsel %vm807, %v802, %v806
        %810 = vrot.lane.b32.xlu0 %v808, 3
        %v811 = vpop.permute.xlu0 %810
        %v813 = vmul.f32 %v743, %v811
        %815 = vrot.lane.b32.xlu0 %v813, 125
        %v816 = vpop.permute.xlu0 %815
        %v818 = vadd.f32 %v797, %v816
        %819 = vrot.lane.b32.xlu0 %v746, 124
        %v820 = vpop.permute.xlu0 %819
        %v822 = vmul.f32 %v739, %v820
        %v823 = vsub.f32 %v738, %v822
        %824 = vrot.lane.b32.xlu0 %v740, 124
        %v825 = vpop.permute.xlu0 %824
        %v827 = vsub.f32 %v738, %v825
        %vm828 = vcmp.eq.s32.totalorder %v742, 4
        %v829 = vsel %vm828, %v823, %v827
        %831 = vrot.lane.b32.xlu0 %v829, 4
        %v832 = vpop.permute.xlu0 %831
        %v834 = vmul.f32 %v743, %v832
        %836 = vrot.lane.b32.xlu0 %v834, 124
        %v837 = vpop.permute.xlu0 %836
        %v839 = vadd.f32 %v818, %v837
        %840 = vrot.lane.b32.xlu0 %v746, 123
        %v841 = vpop.permute.xlu0 %840
        %v843 = vmul.f32 %v739, %v841
        %v844 = vsub.f32 %v738, %v843
        %845 = vrot.lane.b32.xlu0 %v740, 123
        %v846 = vpop.permute.xlu0 %845
        %v848 = vsub.f32 %v738, %v846
        %vm849 = vcmp.eq.s32.totalorder %v742, 5
        %v850 = vsel %vm849, %v844, %v848
        %852 = vrot.lane.b32.xlu0 %v850, 5
        %v853 = vpop.permute.xlu0 %852
        %v855 = vmul.f32 %v743, %v853
        %857 = vrot.lane.b32.xlu0 %v855, 123
        %v858 = vpop.permute.xlu0 %857
        %v860 = vadd.f32 %v839, %v858
        %861 = vrot.lane.b32.xlu0 %v746, 122
        %v862 = vpop.permute.xlu0 %861
        %v864 = vmul.f32 %v739, %v862
        %v865 = vsub.f32 %v738, %v864
        %866 = vrot.lane.b32.xlu0 %v740, 122
        %v867 = vpop.permute.xlu0 %866
        %v869 = vsub.f32 %v738, %v867
        %vm870 = vcmp.eq.s32.totalorder %v742, 6
        %v871 = vsel %vm870, %v865, %v869
        %873 = vrot.lane.b32.xlu0 %v871, 6
        %v874 = vpop.permute.xlu0 %873
        %v876 = vmul.f32 %v743, %v874
        %878 = vrot.lane.b32.xlu0 %v876, 122
        %v879 = vpop.permute.xlu0 %878
        %v881 = vadd.f32 %v860, %v879
        %v882 = vmax.f32 %v739, 1e-12
        %v883 = vrcp.pop %v882
        %v884 = vmul.f32 %v881, -1.0
        %v885 = vmul.f32 %v884, %v883
        %vm886 = vcmask 3072
        %887 = vst.msk [vmem:[%s392] sm:$0xf] %vm886, %v885
      $region60: #{tpu_custom_call.1} parent=43 // pred_fallthru
        _
      %p888 = scmp.lt.s32.totalorder %s22, 0
      %s889 = scalar_select %p888, %s22, 0
      %s890 = smul.addr %s889, 4
      %s891 = scalar_lea.vmem %s6, %s890
      // Predicated region
      $region61: #{tpu_custom_call.1} parent=43 // pred_check
        %p892 = pneg %p218
      $region62: #{tpu_custom_call.1} parent=43 // pred_check_branch
        %894 = sbr.rel (%p892) target = $region64
      $region63: #{tpu_custom_call.1} parent=43 // pred_region
        _
      $region64: #{tpu_custom_call.1} parent=43 // pred_fallthru
        _
      // Predicated region
      $region65: #{tpu_custom_call.1} parent=43 // pred_check
        %p895 = pneg %p218
      $region66: #{tpu_custom_call.1} parent=43 // pred_check_branch
        %897 = sbr.rel (%p895) target = $region68
      $region67: #{tpu_custom_call.1} parent=43 // pred_region
        %p898 = scmp.lt.s32.totalorder %s22, 0
        %s899 = scalar_select %p898, %s22, 0
        %s900 = smul.addr %s899, 4
        %s901 = scalar_lea.vmem %s6, %s900
      $region68: #{tpu_custom_call.1} parent=43 // pred_fallthru
        _
    $region44: #{tpu_custom_call.1} parent=5 // pred_fallthru
      _
    %p902 = scmp.le.s32.totalorder 2, %s12
    // Predicated region
    $region69: #{tpu_custom_call.1} parent=5 // pred_check
      %p903 = pneg %p902
    $region70: #{tpu_custom_call.1} parent=5 // pred_check_branch
      %905 = sbr.rel (%p903) target = $region72
    $region71: #{tpu_custom_call.1} parent=5 // pred_region
      %s906 = ssub.s32 %s12, 2
    $region72: #{tpu_custom_call.1} parent=5 // pred_fallthru
      _
  $region6: #{tpu_custom_call.1} parent=0 // loop_footer
    %s16 = sadd.s32 1, %s12
  $region7: #{tpu_custom_call.1} parent=0 // loop_footer_branch
    %11 = sbr.rel target = $region3
  $region8: #{tpu_custom_call.1} parent=0 // loop_exit
    _

</llo_original>
